<compile_context>
chip_gen: v7x
topology: tpu7x:2x2x1
jax: 0.10.0
libtpu: 0.0.40
codegen_flags: <defaults>
</compile_context>

<pallas_src>
import jax
import jax.numpy as jnp
from jax.experimental import pallas as pl
from jax.experimental.pallas import tpu as pltpu


def _round_up(x, m):
    return (x + m - 1) // m * m


def _pick_compute_dtype():
    """bf16 matmuls/streams on TPU; f32 elsewhere (CPU backend rejects
    bf16 x bf16 = f32 dots, which is what broke the previous version)."""
    try:
        platform = jax.devices()[0].platform
    except Exception:  # pragma: no cover - backend init failure
        platform = "cpu"
    return jnp.bfloat16 if platform == "tpu" else jnp.float32


_COMPUTE_DTYPE = _pick_compute_dtype()


# ---------------------------------------------------------------------------
# Recurrent kernel: one grid step == (batch shard, time CHUNK).
#   1) one big MXU matmul projects the whole chunk's x into an f32 VMEM scratch
#   2) an (partially unrolled) fori_loop runs the serial recurrence with ONE
#      fused (Hp x 3Hp) MXU matmul per time step and a persistent f32 carry.
# ---------------------------------------------------------------------------
def gru_recurrent_kernel(x_ref, wi_ref, bi_ref, whh_ref, bhn_ref, o_ref,
                         wx_ref, h_ref):
    # x_ref  : (Tc, Bs, Dp)   compute dtype   time-major input chunk
    # wi_ref : (Dp, 3*Hp)     compute dtype   fused input weights [r | z | n]
    # bi_ref : (1, 3*Hp)      f32             fused gate biases (b_i + b_h for r,z)
    # whh_ref: (Hp, 3*Hp)     compute dtype   fused recurrent weights [r | z | n]
    # bhn_ref: (1, Hp)        f32             hidden bias of the candidate gate
    # o_ref  : (Tc, Bs, Hp)   compute dtype   per-step hidden states (time-major)
    # wx_ref : (Tc, Bs, 3*Hp) f32 scratch     chunk pre-activations
    # h_ref  : (Bs, Hp)       f32 scratch     carry (persists across time chunks)
    chunk = pl.program_id(1)

    @pl.when(chunk == 0)
    def _():
        h_ref[...] = jnp.zeros_like(h_ref)  # h_init buffer is zeros (hx=None)

    Tc, Bs, Dp = x_ref.shape
    Hp = h_ref.shape[-1]
    G = wi_ref.shape[-1]

    # Fused input projection for the whole chunk: one big MXU matmul
    # (M = Tc*Bs).  Sublane-only reshapes (Bs % 8 == 0) are layout no-ops.
    x2d = x_ref[...].reshape(Tc * Bs, Dp)
    wx2d = jnp.dot(x2d, wi_ref[...], preferred_element_type=jnp.float32)
    wx_ref[...] = (wx2d + bi_ref[...]).reshape(Tc, Bs, G)

    whh = whh_ref[...]                                 # hoisted weight load
    mm_dtype = whh.dtype
    bhn = jnp.broadcast_to(bhn_ref[...], (Bs, Hp))     # hoisted broadcast

    def step(t, carry):
        h = h_ref[...]                                 # f32 carry
        wx_t = wx_ref[t]                               # (Bs, 3*Hp) f32
        uh = jnp.dot(h.astype(mm_dtype), whh,          # one MXU op per step
                     preferred_element_type=jnp.float32)
        # gate math stays f32 (v5e VPU/EUP have no bf16)
        r = jax.nn.sigmoid(wx_t[:, 0:Hp] + uh[:, 0:Hp])
        z = jax.nn.sigmoid(wx_t[:, Hp:2 * Hp] + uh[:, Hp:2 * Hp])
        n = jnp.tanh(wx_t[:, 2 * Hp:] + r * (uh[:, 2 * Hp:] + bhn))
        h_new = (1.0 - z) * n + z * h                  # f32 blend
        h_ref[...] = h_new
        o_ref[t] = h_new.astype(o_ref.dtype)
        return carry

    if Tc <= 16:
        unroll = Tc
    elif Tc % 8 == 0:
        unroll = 8
    elif Tc % 4 == 0:
        unroll = 4
    else:
        unroll = 1
    jax.lax.fori_loop(0, Tc, step, 0, unroll=unroll)


# ---------------------------------------------------------------------------
# Parameter packing: fuse the three gates into padded, lane-dense matrices.
# ---------------------------------------------------------------------------
def pack_gru_params(params, compute_dtype):
    D, H = params["wir"].shape
    Hp = _round_up(H, 128)
    Dp = _round_up(D, 128)
    G = 3 * Hp

    wi = jnp.zeros((Dp, G), jnp.float32)
    wi = wi.at[:D, 0:H].set(params["wir"])
    wi = wi.at[:D, Hp:Hp + H].set(params["wiz"])
    wi = wi.at[:D, 2 * Hp:2 * Hp + H].set(params["win"])

    whh = jnp.zeros((Hp, G), jnp.float32)
    whh = whh.at[:H, 0:H].set(params["whr"])
    whh = whh.at[:H, Hp:Hp + H].set(params["whz"])
    whh = whh.at[:H, 2 * Hp:2 * Hp + H].set(params["whn"])

    bi = jnp.zeros((1, G), jnp.float32)
    bi = bi.at[0, 0:H].set(params["br"][0])          # b_ir + b_hr (same sigmoid)
    bi = bi.at[0, Hp:Hp + H].set(params["bz"][0])    # b_iz + b_hz (same sigmoid)
    bi = bi.at[0, 2 * Hp:2 * Hp + H].set(params["bin"][0])

    bhn = jnp.zeros((1, Hp), jnp.float32).at[0, :H].set(params["bhn"][0])

    return {"H": H, "Hp": Hp, "Dp": Dp,
            "wi": wi.astype(compute_dtype),
            "whh": whh.astype(compute_dtype),
            "bi": bi, "bhn": bhn}


def _choose_time_chunk(T, Bs, Dp, G, Hp, io_bytes, budget_bytes):
    """Largest time chunk whose (double-buffered) blocks + scratch fit budget."""
    # per-time-step VMEM: 2x buffered x-in + 2x buffered out + f32 wx scratch
    per_t = Bs * (2 * Dp * io_bytes + 2 * Hp * io_bytes + G * 4)
    # fixed: 2x buffered weight/bias blocks + f32 carry scratch
    fixed = 2 * io_bytes * (Dp * G + Hp * G) + 2 * 4 * (G + Hp) + 4 * Bs * Hp
    tc = (budget_bytes - fixed) // max(per_t, 1)
    tc = int(max(8, min(tc, max(T, 1))))
    if tc >= T:
        return T
    return max(8, (tc // 8) * 8)


def gru_layer_pallas(x_btd, params, *, compute_dtype=None,
                     vmem_budget_bytes=48 * 1024 * 1024,
                     vmem_limit_bytes=64 * 1024 * 1024):
    """Single unidirectional torch.nn.GRU layer (batch_first) in Pallas."""
    if compute_dtype is None:
        compute_dtype = _COMPUTE_DTYPE
    B, T, D = x_btd.shape
    packed = pack_gru_params(params, compute_dtype)
    H, Hp, Dp = packed["H"], packed["Hp"], packed["Dp"]
    G = 3 * Hp

    Bp = _round_up(B, 8)
    # v7x: shard the padded batch across the 2 TensorCores when each shard
    # stays a multiple of 8 sublanes.  Harmless (grid of size 1/serial loop)
    # on single-TC v5e/v6e.
    n_bshards = 2 if (Bp >= 16 and Bp % 16 == 0) else 1
    Bs = Bp // n_bshards

    io_bytes = jnp.dtype(compute_dtype).itemsize
    # TODO(synk): on v5e/v6e (128 MiB VMEM) the budget/limit can be raised to
    # ~100 MiB so small-batch long sequences fit in a single chunk.
    Tc = _choose_time_chunk(T, Bs, Dp, G, Hp, io_bytes, vmem_budget_bytes)
    Tp = _round_up(T, Tc)
    n_chunks = Tp // Tc

    # Time-major, zero-padded input (padding rows/lanes/steps stay inert and
    # their outputs are sliced off).  This transpose is over the *small* x
    # (D lanes), not the 3*Hp-wide pre-activations.
    x_pad = jnp.zeros((Tp, Bp, Dp), compute_dtype)
    x_pad = x_pad.at[:T, :B, :D].set(
        jnp.transpose(x_btd, (1, 0, 2)).astype(compute_dtype))

    grid_spec = pltpu.PrefetchScalarGridSpec(
        num_scalar_prefetch=0,
        grid=(n_bshards, n_chunks),
        in_specs=[
            pl.BlockSpec((Tc, Bs, Dp), lambda b, c: (c, b, 0)),
            # TODO(synk): single-buffer these constant-resident weight blocks
            # (pipeline_mode=pl.Buffered(1)) to reclaim VMEM for a larger time
            # chunk on v7x once confirmed supported on the target toolchain.
            pl.BlockSpec((Dp, G), lambda b, c: (0, 0)),
            pl.BlockSpec((1, G), lambda b, c: (0, 0)),
            pl.BlockSpec((Hp, G), lambda b, c: (0, 0)),
            pl.BlockSpec((1, Hp), lambda b, c: (0, 0)),
        ],
        out_specs=pl.BlockSpec((Tc, Bs, Hp), lambda b, c: (c, b, 0)),
        scratch_shapes=[
            pltpu.VMEM((Tc, Bs, G), jnp.float32),   # chunk pre-activations
            pltpu.VMEM((Bs, Hp), jnp.float32),      # hidden-state carry
        ],
    )

    out_tbh = pl.pallas_call(
        gru_recurrent_kernel,
        out_shape=jax.ShapeDtypeStruct((Tp, Bp, Hp), compute_dtype),
        grid_spec=grid_spec,
        compiler_params=pltpu.CompilerParams(
            # batch shards are independent; time is inherently serial
            dimension_semantics=("parallel", "arbitrary"),
            vmem_limit_bytes=vmem_limit_bytes),
    )(x_pad, packed["wi"], packed["bi"], packed["whh"], packed["bhn"])

    # transpose back to batch_first on the narrow dtype; strip padding
    return jnp.transpose(out_tbh, (1, 0, 2))[:B, :T, :H]


def init_gru_layer_params(key, input_size, hidden_size, re_init=True):
    """Deterministic synthetic parameters matching torch.nn.GRU shapes."""
    H = hidden_size
    D = input_size
    bound = 1.0 / float(jnp.sqrt(jnp.asarray(float(H))))
    k_ih, k_bih, k_bhh, k_hh = jax.random.split(key, 4)

    w_ih = jax.random.uniform(k_ih, (3 * H, D), jnp.float32, -bound, bound)
    b_ih = jax.random.uniform(k_bih, (3 * H,), jnp.float32, -bound, bound)
    b_hh = jax.random.uniform(k_bhh, (3 * H,), jnp.float32, -bound, bound)

    if re_init:
        # rnn_init: nn.init.orthogonal_ on weight_hh (orthonormal columns).
        a = jax.random.normal(k_hh, (3 * H, H), jnp.float32)
        q, r = jnp.linalg.qr(a)
        w_hh = q * jnp.sign(jnp.diag(r))[None, :]
    else:
        w_hh = jax.random.uniform(k_hh, (3 * H, H), jnp.float32, -bound, bound)

    # torch chunk order along dim 0: [r, z, n]
    w_ir, w_iz, w_in = jnp.split(w_ih, 3, axis=0)
    w_hr, w_hz, w_hn = jnp.split(w_hh, 3, axis=0)
    b_ir, b_iz, b_in = jnp.split(b_ih, 3)
    b_hr, b_hz, b_hn = jnp.split(b_hh, 3)

    return {
        "wir": w_ir.T, "wiz": w_iz.T, "win": w_in.T,        # (D, H)
        "whr": w_hr.T, "whz": w_hz.T, "whn": w_hn.T,        # (H, H)
        "br": (b_ir + b_hr).reshape(1, H),
        "bz": (b_iz + b_hz).reshape(1, H),
        "bin": b_in.reshape(1, H),
        "bhn": b_hn.reshape(1, H),
    }


def gru_forward(x, layer_params):
    """Equivalent of GRU.forward(x, hx=None) -> (output, hh)."""
    if x.ndim == 4:
        x = x.reshape(x.shape[0], x.shape[1], x.shape[2] * x.shape[3])
    h_last = []
    for params in layer_params:
        x = gru_layer_pallas(x, params)   # stays in compute dtype between layers
        # dropout between layers is a no-op (p=0.0 default)
        h_last.append(x[:, -1, :])
    out = x.astype(jnp.float32)
    h = jnp.stack([h.astype(jnp.float32) for h in h_last], axis=1)  # (B, L, H)
    h = jnp.transpose(h, (1, 0, 2))        # (L, B, H)  (non-bidirectional path)
    # TODO(synk): compute_local_loss (spectral norms of weight_hh chunks) is a
    # training-side buffer, not part of the returned forward values; omitted.
    return out, h


# ---------------- pure-JAX reference (for correctness check) ----------------
def gru_layer_ref(x_btd, params):
    B, T, D = x_btd.shape
    H = params["whr"].shape[0]

    def step(h, x_t):
        r = jax.nn.sigmoid(x_t @ params["wir"] + h @ params["whr"] + params["br"])
        z = jax.nn.sigmoid(x_t @ params["wiz"] + h @ params["whz"] + params["bz"])
        n = jnp.tanh(x_t @ params["win"] + params["bin"]
                     + r * (h @ params["whn"] + params["bhn"]))
        h_new = (1.0 - z) * n + z * h
        return h_new, h_new

    h0 = jnp.zeros((B, H), jnp.float32)
    _, ys = jax.lax.scan(step, h0, jnp.transpose(x_btd, (1, 0, 2)))
    return jnp.transpose(ys, (1, 0, 2))


if __name__ == "__main__":
    key = jax.random.PRNGKey(0)
    k_x, k_p = jax.random.split(key)

    B, T, F1, F2 = 2, 8, 4, 8     # input_shape = [2, 8, 4, 8] -> fea_dim = 32
    H = 32
    num_layers = 1                # default in the PyTorch module

    x = jax.random.normal(k_x, (B, T, F1, F2), jnp.float32)

    layer_params = []
    current_dim = F1 * F2
    for i in range(num_layers):
        layer_params.append(
            init_gru_layer_params(jax.random.fold_in(k_p, i), current_dim, H))
        current_dim = H

    output, hh = gru_forward(x, layer_params)
    output = jax.block_until_ready(output)
    hh = jax.block_until_ready(hh)

    # correctness check vs pure-JAX f32 scan reference (kernel matmuls/streams
    # may be bf16 with f32 accumulation -> looser tolerance)
    x_ref = x.reshape(B, T, F1 * F2)
    ref = x_ref
    for p in layer_params:
        ref = gru_layer_ref(ref, p)
    assert output.shape == (B, T, H)
    assert hh.shape == (num_layers, B, H)
    assert jnp.allclose(output, ref, atol=2e-2, rtol=2e-2), "mismatch vs reference"
    assert jnp.allclose(hh[-1], ref[:, -1, :], atol=2e-2, rtol=2e-2)

    print("KERNEL_OK")
</pallas_src>

<mosaic_0001>
module attributes {stable_mosaic.version = 11 : i64} {
  func.func @gru_recurrent_kernel(%arg0: i32, %arg1: i32, %arg2: memref<8x8x128xf32, #tpu.memory_space<vmem>>, %arg3: memref<128x384xf32, #tpu.memory_space<vmem>>, %arg4: memref<1x384xf32, #tpu.memory_space<vmem>>, %arg5: memref<128x384xf32, #tpu.memory_space<vmem>>, %arg6: memref<1x128xf32, #tpu.memory_space<vmem>>, %arg7: memref<8x8x128xf32, #tpu.memory_space<vmem>>, %arg8: memref<8x8x384xf32, #tpu.memory_space<vmem>>, %arg9: memref<8x128xf32, #tpu.memory_space<vmem>>) attributes {dimension_semantics = [#tpu.dimension_semantics<parallel>, #tpu.dimension_semantics<arbitrary>], iteration_bounds = array<i64: 1, 1>, scalar_prefetch = 0 : i64, scratch_operands = 2 : i64, tpu.core_type = #tpu.core_type<tc>, window_params = [{transform_indices = @transform_0, window_bounds = array<i64: 8, 8, 128>}, {pipeline_mode = #tpu.pipeline_mode<synchronous>, transform_indices = @transform_1, window_bounds = array<i64: 128, 384>}, {pipeline_mode = #tpu.pipeline_mode<synchronous>, transform_indices = @transform_2, window_bounds = array<i64: 1, 384>}, {pipeline_mode = #tpu.pipeline_mode<synchronous>, transform_indices = @transform_3, window_bounds = array<i64: 128, 384>}, {pipeline_mode = #tpu.pipeline_mode<synchronous>, transform_indices = @transform_4, window_bounds = array<i64: 1, 128>}, {transform_indices = @transform_5, window_bounds = array<i64: 8, 8, 128>}]} {
    %c0_i32 = arith.constant 0 : i32
    %0 = arith.cmpi eq, %arg1, %c0_i32 : i32
    %1 = arith.extui %0 : i1 to i32
    %c0_i32_0 = arith.constant 0 : i32
    %2 = arith.cmpi ne, %1, %c0_i32_0 : i32
    scf.if %2 {
      %cst_111 = arith.constant 0.000000e+00 : f32
      %312 = vector.broadcast %cst_111 : f32 to vector<8x128xf32>
      %c0_112 = arith.constant 0 : index
      %c0_113 = arith.constant 0 : index
      %313 = vector.load %arg9[%c0_112, %c0_113] : memref<8x128xf32, #tpu.memory_space<vmem>>, vector<8x128xf32>
      tpu.vector_store %arg9[%c0_112, %c0_113], %312 {strides = array<i32>} : memref<8x128xf32, #tpu.memory_space<vmem>>, vector<8x128xf32>,
    } else {
    }
    %c0 = arith.constant 0 : index
    %c0_1 = arith.constant 0 : index
    %c0_2 = arith.constant 0 : index
    %3 = vector.load %arg2[%c0, %c0_1, %c0_2] : memref<8x8x128xf32, #tpu.memory_space<vmem>>, vector<8x8x128xf32>
    %4 = vector.shape_cast %3 : vector<8x8x128xf32> to vector<64x128xf32>
    %c0_3 = arith.constant 0 : index
    %c0_4 = arith.constant 0 : index
    %5 = vector.load %arg3[%c0_3, %c0_4] : memref<128x384xf32, #tpu.memory_space<vmem>>, vector<128x384xf32>
    %cst = arith.constant dense<0.000000e+00> : vector<64x384xf32>
    %6 = tpu.matmul %4, %5, %cst {dimension_numbers = #tpu.dot_dimension_numbers<[1], [0], [0], [1], [0, 0, 1, 1], [], []>} : vector<64x128xf32>, vector<128x384xf32>, vector<64x384xf32> -> vector<64x384xf32>
    %c0_5 = arith.constant 0 : index
    %c0_6 = arith.constant 0 : index
    %7 = vector.load %arg4[%c0_5, %c0_6] : memref<1x384xf32, #tpu.memory_space<vmem>>, vector<1x384xf32>
    %8 = vector.broadcast %7 : vector<1x384xf32> to vector<64x384xf32>
    %9 = arith.addf %6, %8 : vector<64x384xf32>
    %10 = vector.shape_cast %9 : vector<64x384xf32> to vector<8x8x384xf32>
    %c0_7 = arith.constant 0 : index
    %c0_8 = arith.constant 0 : index
    %c0_9 = arith.constant 0 : index
    %11 = vector.load %arg8[%c0_7, %c0_8, %c0_9] : memref<8x8x384xf32, #tpu.memory_space<vmem>>, vector<8x8x384xf32>
    tpu.vector_store %arg8[%c0_7, %c0_8, %c0_9], %10 {strides = array<i32>} : memref<8x8x384xf32, #tpu.memory_space<vmem>>, vector<8x8x384xf32>,
    %c0_10 = arith.constant 0 : index
    %c0_11 = arith.constant 0 : index
    %12 = vector.load %arg5[%c0_10, %c0_11] : memref<128x384xf32, #tpu.memory_space<vmem>>, vector<128x384xf32>
    %c0_12 = arith.constant 0 : index
    %c0_13 = arith.constant 0 : index
    %13 = vector.load %arg6[%c0_12, %c0_13] : memref<1x128xf32, #tpu.memory_space<vmem>>, vector<1x128xf32>
    %14 = vector.shape_cast %13 : vector<1x128xf32> to vector<1x128xf32>
    %15 = vector.broadcast %14 : vector<1x128xf32> to vector<8x128xf32>
    %c0_i32_14 = arith.constant 0 : i32
    %c0_15 = arith.constant 0 : index
    %c0_16 = arith.constant 0 : index
    %16 = vector.load %arg9[%c0_15, %c0_16] : memref<8x128xf32, #tpu.memory_space<vmem>>, vector<8x128xf32>
    %17 = arith.index_cast %c0_i32_14 : i32 to index
    %c0_17 = arith.constant 0 : index
    %c0_18 = arith.constant 0 : index
    %18 = vector.load %arg8[%17, %c0_17, %c0_18] : memref<8x8x384xf32, #tpu.memory_space<vmem>>, vector<1x8x384xf32>
    %19 = vector.shape_cast %18 : vector<1x8x384xf32> to vector<8x384xf32>
    %cst_19 = arith.constant dense<0.000000e+00> : vector<8x384xf32>
    %20 = tpu.matmul %16, %12, %cst_19 {dimension_numbers = #tpu.dot_dimension_numbers<[1], [0], [0], [1], [0, 0, 1, 1], [], []>} : vector<8x128xf32>, vector<128x384xf32>, vector<8x384xf32> -> vector<8x384xf32>
    %21 = vector.extract_strided_slice %19 {offsets = [0, 0], sizes = [8, 128], strides = [1, 1]} : vector<8x384xf32> to vector<8x128xf32>
    %22 = vector.extract_strided_slice %20 {offsets = [0, 0], sizes = [8, 128], strides = [1, 1]} : vector<8x384xf32> to vector<8x128xf32>
    %23 = arith.addf %21, %22 : vector<8x128xf32>
    %24 = arith.negf %23 : vector<8x128xf32>
    %25 = math.exp %24 : vector<8x128xf32>
    %cst_20 = arith.constant 1.000000e+00 : f32
    %26 = vector.broadcast %cst_20 : f32 to vector<8x128xf32>
    %27 = arith.addf %26, %25 : vector<8x128xf32>
    %28 = arith.divf %26, %27 : vector<8x128xf32>
    %29 = vector.extract_strided_slice %19 {offsets = [0, 128], sizes = [8, 128], strides = [1, 1]} : vector<8x384xf32> to vector<8x128xf32>
    %30 = vector.extract_strided_slice %20 {offsets = [0, 128], sizes = [8, 128], strides = [1, 1]} : vector<8x384xf32> to vector<8x128xf32>
    %31 = arith.addf %29, %30 : vector<8x128xf32>
    %32 = arith.negf %31 : vector<8x128xf32>
    %33 = math.exp %32 : vector<8x128xf32>
    %cst_21 = arith.constant 1.000000e+00 : f32
    %34 = vector.broadcast %cst_21 : f32 to vector<8x128xf32>
    %35 = arith.addf %34, %33 : vector<8x128xf32>
    %36 = arith.divf %34, %35 : vector<8x128xf32>
    %37 = vector.extract_strided_slice %19 {offsets = [0, 256], sizes = [8, 128], strides = [1, 1]} : vector<8x384xf32> to vector<8x128xf32>
    %38 = vector.extract_strided_slice %20 {offsets = [0, 256], sizes = [8, 128], strides = [1, 1]} : vector<8x384xf32> to vector<8x128xf32>
    %39 = arith.addf %38, %15 : vector<8x128xf32>
    %40 = arith.mulf %28, %39 : vector<8x128xf32>
    %41 = arith.addf %37, %40 : vector<8x128xf32>
    %42 = math.tanh %41 : vector<8x128xf32>
    %cst_22 = arith.constant 1.000000e+00 : f32
    %43 = vector.broadcast %cst_22 : f32 to vector<8x128xf32>
    %44 = arith.subf %43, %36 : vector<8x128xf32>
    %45 = arith.mulf %44, %42 : vector<8x128xf32>
    %46 = arith.mulf %36, %16 : vector<8x128xf32>
    %47 = arith.addf %45, %46 : vector<8x128xf32>
    %c0_23 = arith.constant 0 : index
    %c0_24 = arith.constant 0 : index
    %48 = vector.load %arg9[%c0_23, %c0_24] : memref<8x128xf32, #tpu.memory_space<vmem>>, vector<8x128xf32>
    tpu.vector_store %arg9[%c0_23, %c0_24], %47 {strides = array<i32>} : memref<8x128xf32, #tpu.memory_space<vmem>>, vector<8x128xf32>,
    %49 = arith.index_cast %c0_i32_14 : i32 to index
    %c0_25 = arith.constant 0 : index
    %c0_26 = arith.constant 0 : index
    %50 = vector.load %arg7[%49, %c0_25, %c0_26] : memref<8x8x128xf32, #tpu.memory_space<vmem>>, vector<1x8x128xf32>
    %51 = vector.shape_cast %50 : vector<1x8x128xf32> to vector<8x128xf32>
    %52 = vector.shape_cast %47 : vector<8x128xf32> to vector<1x8x128xf32>
    tpu.vector_store %arg7[%49, %c0_25, %c0_26], %52 {strides = array<i32>} : memref<8x8x128xf32, #tpu.memory_space<vmem>>, vector<1x8x128xf32>,
    %c1_i32 = arith.constant 1 : i32
    %c0_27 = arith.constant 0 : index
    %c0_28 = arith.constant 0 : index
    %53 = vector.load %arg9[%c0_27, %c0_28] : memref<8x128xf32, #tpu.memory_space<vmem>>, vector<8x128xf32>
    %54 = arith.index_cast %c1_i32 : i32 to index
    %c0_29 = arith.constant 0 : index
    %c0_30 = arith.constant 0 : index
    %55 = vector.load %arg8[%54, %c0_29, %c0_30] : memref<8x8x384xf32, #tpu.memory_space<vmem>>, vector<1x8x384xf32>
    %56 = vector.shape_cast %55 : vector<1x8x384xf32> to vector<8x384xf32>
    %cst_31 = arith.constant dense<0.000000e+00> : vector<8x384xf32>
    %57 = tpu.matmul %53, %12, %cst_31 {dimension_numbers = #tpu.dot_dimension_numbers<[1], [0], [0], [1], [0, 0, 1, 1], [], []>} : vector<8x128xf32>, vector<128x384xf32>, vector<8x384xf32> -> vector<8x384xf32>
    %58 = vector.extract_strided_slice %56 {offsets = [0, 0], sizes = [8, 128], strides = [1, 1]} : vector<8x384xf32> to vector<8x128xf32>
    %59 = vector.extract_strided_slice %57 {offsets = [0, 0], sizes = [8, 128], strides = [1, 1]} : vector<8x384xf32> to vector<8x128xf32>
    %60 = arith.addf %58, %59 : vector<8x128xf32>
    %61 = arith.negf %60 : vector<8x128xf32>
    %62 = math.exp %61 : vector<8x128xf32>
    %cst_32 = arith.constant 1.000000e+00 : f32
    %63 = vector.broadcast %cst_32 : f32 to vector<8x128xf32>
    %64 = arith.addf %63, %62 : vector<8x128xf32>
    %65 = arith.divf %63, %64 : vector<8x128xf32>
    %66 = vector.extract_strided_slice %56 {offsets = [0, 128], sizes = [8, 128], strides = [1, 1]} : vector<8x384xf32> to vector<8x128xf32>
    %67 = vector.extract_strided_slice %57 {offsets = [0, 128], sizes = [8, 128], strides = [1, 1]} : vector<8x384xf32> to vector<8x128xf32>
    %68 = arith.addf %66, %67 : vector<8x128xf32>
    %69 = arith.negf %68 : vector<8x128xf32>
    %70 = math.exp %69 : vector<8x128xf32>
    %cst_33 = arith.constant 1.000000e+00 : f32
    %71 = vector.broadcast %cst_33 : f32 to vector<8x128xf32>
    %72 = arith.addf %71, %70 : vector<8x128xf32>
    %73 = arith.divf %71, %72 : vector<8x128xf32>
    %74 = vector.extract_strided_slice %56 {offsets = [0, 256], sizes = [8, 128], strides = [1, 1]} : vector<8x384xf32> to vector<8x128xf32>
    %75 = vector.extract_strided_slice %57 {offsets = [0, 256], sizes = [8, 128], strides = [1, 1]} : vector<8x384xf32> to vector<8x128xf32>
    %76 = arith.addf %75, %15 : vector<8x128xf32>
    %77 = arith.mulf %65, %76 : vector<8x128xf32>
    %78 = arith.addf %74, %77 : vector<8x128xf32>
    %79 = math.tanh %78 : vector<8x128xf32>
    %cst_34 = arith.constant 1.000000e+00 : f32
    %80 = vector.broadcast %cst_34 : f32 to vector<8x128xf32>
    %81 = arith.subf %80, %73 : vector<8x128xf32>
    %82 = arith.mulf %81, %79 : vector<8x128xf32>
    %83 = arith.mulf %73, %53 : vector<8x128xf32>
    %84 = arith.addf %82, %83 : vector<8x128xf32>
    %c0_35 = arith.constant 0 : index
    %c0_36 = arith.constant 0 : index
    %85 = vector.load %arg9[%c0_35, %c0_36] : memref<8x128xf32, #tpu.memory_space<vmem>>, vector<8x128xf32>
    tpu.vector_store %arg9[%c0_35, %c0_36], %84 {strides = array<i32>} : memref<8x128xf32, #tpu.memory_space<vmem>>, vector<8x128xf32>,
    %86 = arith.index_cast %c1_i32 : i32 to index
    %c0_37 = arith.constant 0 : index
    %c0_38 = arith.constant 0 : index
    %87 = vector.load %arg7[%86, %c0_37, %c0_38] : memref<8x8x128xf32, #tpu.memory_space<vmem>>, vector<1x8x128xf32>
    %88 = vector.shape_cast %87 : vector<1x8x128xf32> to vector<8x128xf32>
    %89 = vector.shape_cast %84 : vector<8x128xf32> to vector<1x8x128xf32>
    tpu.vector_store %arg7[%86, %c0_37, %c0_38], %89 {strides = array<i32>} : memref<8x8x128xf32, #tpu.memory_space<vmem>>, vector<1x8x128xf32>,
    %c2_i32 = arith.constant 2 : i32
    %c0_39 = arith.constant 0 : index
    %c0_40 = arith.constant 0 : index
    %90 = vector.load %arg9[%c0_39, %c0_40] : memref<8x128xf32, #tpu.memory_space<vmem>>, vector<8x128xf32>
    %91 = arith.index_cast %c2_i32 : i32 to index
    %c0_41 = arith.constant 0 : index
    %c0_42 = arith.constant 0 : index
    %92 = vector.load %arg8[%91, %c0_41, %c0_42] : memref<8x8x384xf32, #tpu.memory_space<vmem>>, vector<1x8x384xf32>
    %93 = vector.shape_cast %92 : vector<1x8x384xf32> to vector<8x384xf32>
    %cst_43 = arith.constant dense<0.000000e+00> : vector<8x384xf32>
    %94 = tpu.matmul %90, %12, %cst_43 {dimension_numbers = #tpu.dot_dimension_numbers<[1], [0], [0], [1], [0, 0, 1, 1], [], []>} : vector<8x128xf32>, vector<128x384xf32>, vector<8x384xf32> -> vector<8x384xf32>
    %95 = vector.extract_strided_slice %93 {offsets = [0, 0], sizes = [8, 128], strides = [1, 1]} : vector<8x384xf32> to vector<8x128xf32>
    %96 = vector.extract_strided_slice %94 {offsets = [0, 0], sizes = [8, 128], strides = [1, 1]} : vector<8x384xf32> to vector<8x128xf32>
    %97 = arith.addf %95, %96 : vector<8x128xf32>
    %98 = arith.negf %97 : vector<8x128xf32>
    %99 = math.exp %98 : vector<8x128xf32>
    %cst_44 = arith.constant 1.000000e+00 : f32
    %100 = vector.broadcast %cst_44 : f32 to vector<8x128xf32>
    %101 = arith.addf %100, %99 : vector<8x128xf32>
    %102 = arith.divf %100, %101 : vector<8x128xf32>
    %103 = vector.extract_strided_slice %93 {offsets = [0, 128], sizes = [8, 128], strides = [1, 1]} : vector<8x384xf32> to vector<8x128xf32>
    %104 = vector.extract_strided_slice %94 {offsets = [0, 128], sizes = [8, 128], strides = [1, 1]} : vector<8x384xf32> to vector<8x128xf32>
    %105 = arith.addf %103, %104 : vector<8x128xf32>
    %106 = arith.negf %105 : vector<8x128xf32>
    %107 = math.exp %106 : vector<8x128xf32>
    %cst_45 = arith.constant 1.000000e+00 : f32
    %108 = vector.broadcast %cst_45 : f32 to vector<8x128xf32>
    %109 = arith.addf %108, %107 : vector<8x128xf32>
    %110 = arith.divf %108, %109 : vector<8x128xf32>
    %111 = vector.extract_strided_slice %93 {offsets = [0, 256], sizes = [8, 128], strides = [1, 1]} : vector<8x384xf32> to vector<8x128xf32>
    %112 = vector.extract_strided_slice %94 {offsets = [0, 256], sizes = [8, 128], strides = [1, 1]} : vector<8x384xf32> to vector<8x128xf32>
    %113 = arith.addf %112, %15 : vector<8x128xf32>
    %114 = arith.mulf %102, %113 : vector<8x128xf32>
    %115 = arith.addf %111, %114 : vector<8x128xf32>
    %116 = math.tanh %115 : vector<8x128xf32>
    %cst_46 = arith.constant 1.000000e+00 : f32
    %117 = vector.broadcast %cst_46 : f32 to vector<8x128xf32>
    %118 = arith.subf %117, %110 : vector<8x128xf32>
    %119 = arith.mulf %118, %116 : vector<8x128xf32>
    %120 = arith.mulf %110, %90 : vector<8x128xf32>
    %121 = arith.addf %119, %120 : vector<8x128xf32>
    %c0_47 = arith.constant 0 : index
    %c0_48 = arith.constant 0 : index
    %122 = vector.load %arg9[%c0_47, %c0_48] : memref<8x128xf32, #tpu.memory_space<vmem>>, vector<8x128xf32>
    tpu.vector_store %arg9[%c0_47, %c0_48], %121 {strides = array<i32>} : memref<8x128xf32, #tpu.memory_space<vmem>>, vector<8x128xf32>,
    %123 = arith.index_cast %c2_i32 : i32 to index
    %c0_49 = arith.constant 0 : index
    %c0_50 = arith.constant 0 : index
    %124 = vector.load %arg7[%123, %c0_49, %c0_50] : memref<8x8x128xf32, #tpu.memory_space<vmem>>, vector<1x8x128xf32>
    %125 = vector.shape_cast %124 : vector<1x8x128xf32> to vector<8x128xf32>
    %126 = vector.shape_cast %121 : vector<8x128xf32> to vector<1x8x128xf32>
    tpu.vector_store %arg7[%123, %c0_49, %c0_50], %126 {strides = array<i32>} : memref<8x8x128xf32, #tpu.memory_space<vmem>>, vector<1x8x128xf32>,
    %c3_i32 = arith.constant 3 : i32
    %c0_51 = arith.constant 0 : index
    %c0_52 = arith.constant 0 : index
    %127 = vector.load %arg9[%c0_51, %c0_52] : memref<8x128xf32, #tpu.memory_space<vmem>>, vector<8x128xf32>
    %128 = arith.index_cast %c3_i32 : i32 to index
    %c0_53 = arith.constant 0 : index
    %c0_54 = arith.constant 0 : index
    %129 = vector.load %arg8[%128, %c0_53, %c0_54] : memref<8x8x384xf32, #tpu.memory_space<vmem>>, vector<1x8x384xf32>
    %130 = vector.shape_cast %129 : vector<1x8x384xf32> to vector<8x384xf32>
    %cst_55 = arith.constant dense<0.000000e+00> : vector<8x384xf32>
    %131 = tpu.matmul %127, %12, %cst_55 {dimension_numbers = #tpu.dot_dimension_numbers<[1], [0], [0], [1], [0, 0, 1, 1], [], []>} : vector<8x128xf32>, vector<128x384xf32>, vector<8x384xf32> -> vector<8x384xf32>
    %132 = vector.extract_strided_slice %130 {offsets = [0, 0], sizes = [8, 128], strides = [1, 1]} : vector<8x384xf32> to vector<8x128xf32>
    %133 = vector.extract_strided_slice %131 {offsets = [0, 0], sizes = [8, 128], strides = [1, 1]} : vector<8x384xf32> to vector<8x128xf32>
    %134 = arith.addf %132, %133 : vector<8x128xf32>
    %135 = arith.negf %134 : vector<8x128xf32>
    %136 = math.exp %135 : vector<8x128xf32>
    %cst_56 = arith.constant 1.000000e+00 : f32
    %137 = vector.broadcast %cst_56 : f32 to vector<8x128xf32>
    %138 = arith.addf %137, %136 : vector<8x128xf32>
    %139 = arith.divf %137, %138 : vector<8x128xf32>
    %140 = vector.extract_strided_slice %130 {offsets = [0, 128], sizes = [8, 128], strides = [1, 1]} : vector<8x384xf32> to vector<8x128xf32>
    %141 = vector.extract_strided_slice %131 {offsets = [0, 128], sizes = [8, 128], strides = [1, 1]} : vector<8x384xf32> to vector<8x128xf32>
    %142 = arith.addf %140, %141 : vector<8x128xf32>
    %143 = arith.negf %142 : vector<8x128xf32>
    %144 = math.exp %143 : vector<8x128xf32>
    %cst_57 = arith.constant 1.000000e+00 : f32
    %145 = vector.broadcast %cst_57 : f32 to vector<8x128xf32>
    %146 = arith.addf %145, %144 : vector<8x128xf32>
    %147 = arith.divf %145, %146 : vector<8x128xf32>
    %148 = vector.extract_strided_slice %130 {offsets = [0, 256], sizes = [8, 128], strides = [1, 1]} : vector<8x384xf32> to vector<8x128xf32>
    %149 = vector.extract_strided_slice %131 {offsets = [0, 256], sizes = [8, 128], strides = [1, 1]} : vector<8x384xf32> to vector<8x128xf32>
    %150 = arith.addf %149, %15 : vector<8x128xf32>
    %151 = arith.mulf %139, %150 : vector<8x128xf32>
    %152 = arith.addf %148, %151 : vector<8x128xf32>
    %153 = math.tanh %152 : vector<8x128xf32>
    %cst_58 = arith.constant 1.000000e+00 : f32
    %154 = vector.broadcast %cst_58 : f32 to vector<8x128xf32>
    %155 = arith.subf %154, %147 : vector<8x128xf32>
    %156 = arith.mulf %155, %153 : vector<8x128xf32>
    %157 = arith.mulf %147, %127 : vector<8x128xf32>
    %158 = arith.addf %156, %157 : vector<8x128xf32>
    %c0_59 = arith.constant 0 : index
    %c0_60 = arith.constant 0 : index
    %159 = vector.load %arg9[%c0_59, %c0_60] : memref<8x128xf32, #tpu.memory_space<vmem>>, vector<8x128xf32>
    tpu.vector_store %arg9[%c0_59, %c0_60], %158 {strides = array<i32>} : memref<8x128xf32, #tpu.memory_space<vmem>>, vector<8x128xf32>,
    %160 = arith.index_cast %c3_i32 : i32 to index
    %c0_61 = arith.constant 0 : index
    %c0_62 = arith.constant 0 : index
    %161 = vector.load %arg7[%160, %c0_61, %c0_62] : memref<8x8x128xf32, #tpu.memory_space<vmem>>, vector<1x8x128xf32>
    %162 = vector.shape_cast %161 : vector<1x8x128xf32> to vector<8x128xf32>
    %163 = vector.shape_cast %158 : vector<8x128xf32> to vector<1x8x128xf32>
    tpu.vector_store %arg7[%160, %c0_61, %c0_62], %163 {strides = array<i32>} : memref<8x8x128xf32, #tpu.memory_space<vmem>>, vector<1x8x128xf32>,
    %c4_i32 = arith.constant 4 : i32
    %c0_63 = arith.constant 0 : index
    %c0_64 = arith.constant 0 : index
    %164 = vector.load %arg9[%c0_63, %c0_64] : memref<8x128xf32, #tpu.memory_space<vmem>>, vector<8x128xf32>
    %165 = arith.index_cast %c4_i32 : i32 to index
    %c0_65 = arith.constant 0 : index
    %c0_66 = arith.constant 0 : index
    %166 = vector.load %arg8[%165, %c0_65, %c0_66] : memref<8x8x384xf32, #tpu.memory_space<vmem>>, vector<1x8x384xf32>
    %167 = vector.shape_cast %166 : vector<1x8x384xf32> to vector<8x384xf32>
    %cst_67 = arith.constant dense<0.000000e+00> : vector<8x384xf32>
    %168 = tpu.matmul %164, %12, %cst_67 {dimension_numbers = #tpu.dot_dimension_numbers<[1], [0], [0], [1], [0, 0, 1, 1], [], []>} : vector<8x128xf32>, vector<128x384xf32>, vector<8x384xf32> -> vector<8x384xf32>
    %169 = vector.extract_strided_slice %167 {offsets = [0, 0], sizes = [8, 128], strides = [1, 1]} : vector<8x384xf32> to vector<8x128xf32>
    %170 = vector.extract_strided_slice %168 {offsets = [0, 0], sizes = [8, 128], strides = [1, 1]} : vector<8x384xf32> to vector<8x128xf32>
    %171 = arith.addf %169, %170 : vector<8x128xf32>
    %172 = arith.negf %171 : vector<8x128xf32>
    %173 = math.exp %172 : vector<8x128xf32>
    %cst_68 = arith.constant 1.000000e+00 : f32
    %174 = vector.broadcast %cst_68 : f32 to vector<8x128xf32>
    %175 = arith.addf %174, %173 : vector<8x128xf32>
    %176 = arith.divf %174, %175 : vector<8x128xf32>
    %177 = vector.extract_strided_slice %167 {offsets = [0, 128], sizes = [8, 128], strides = [1, 1]} : vector<8x384xf32> to vector<8x128xf32>
    %178 = vector.extract_strided_slice %168 {offsets = [0, 128], sizes = [8, 128], strides = [1, 1]} : vector<8x384xf32> to vector<8x128xf32>
    %179 = arith.addf %177, %178 : vector<8x128xf32>
    %180 = arith.negf %179 : vector<8x128xf32>
    %181 = math.exp %180 : vector<8x128xf32>
    %cst_69 = arith.constant 1.000000e+00 : f32
    %182 = vector.broadcast %cst_69 : f32 to vector<8x128xf32>
    %183 = arith.addf %182, %181 : vector<8x128xf32>
    %184 = arith.divf %182, %183 : vector<8x128xf32>
    %185 = vector.extract_strided_slice %167 {offsets = [0, 256], sizes = [8, 128], strides = [1, 1]} : vector<8x384xf32> to vector<8x128xf32>
    %186 = vector.extract_strided_slice %168 {offsets = [0, 256], sizes = [8, 128], strides = [1, 1]} : vector<8x384xf32> to vector<8x128xf32>
    %187 = arith.addf %186, %15 : vector<8x128xf32>
    %188 = arith.mulf %176, %187 : vector<8x128xf32>
    %189 = arith.addf %185, %188 : vector<8x128xf32>
    %190 = math.tanh %189 : vector<8x128xf32>
    %cst_70 = arith.constant 1.000000e+00 : f32
    %191 = vector.broadcast %cst_70 : f32 to vector<8x128xf32>
    %192 = arith.subf %191, %184 : vector<8x128xf32>
    %193 = arith.mulf %192, %190 : vector<8x128xf32>
    %194 = arith.mulf %184, %164 : vector<8x128xf32>
    %195 = arith.addf %193, %194 : vector<8x128xf32>
    %c0_71 = arith.constant 0 : index
    %c0_72 = arith.constant 0 : index
    %196 = vector.load %arg9[%c0_71, %c0_72] : memref<8x128xf32, #tpu.memory_space<vmem>>, vector<8x128xf32>
    tpu.vector_store %arg9[%c0_71, %c0_72], %195 {strides = array<i32>} : memref<8x128xf32, #tpu.memory_space<vmem>>, vector<8x128xf32>,
    %197 = arith.index_cast %c4_i32 : i32 to index
    %c0_73 = arith.constant 0 : index
    %c0_74 = arith.constant 0 : index
    %198 = vector.load %arg7[%197, %c0_73, %c0_74] : memref<8x8x128xf32, #tpu.memory_space<vmem>>, vector<1x8x128xf32>
    %199 = vector.shape_cast %198 : vector<1x8x128xf32> to vector<8x128xf32>
    %200 = vector.shape_cast %195 : vector<8x128xf32> to vector<1x8x128xf32>
    tpu.vector_store %arg7[%197, %c0_73, %c0_74], %200 {strides = array<i32>} : memref<8x8x128xf32, #tpu.memory_space<vmem>>, vector<1x8x128xf32>,
    %c5_i32 = arith.constant 5 : i32
    %c0_75 = arith.constant 0 : index
    %c0_76 = arith.constant 0 : index
    %201 = vector.load %arg9[%c0_75, %c0_76] : memref<8x128xf32, #tpu.memory_space<vmem>>, vector<8x128xf32>
    %202 = arith.index_cast %c5_i32 : i32 to index
    %c0_77 = arith.constant 0 : index
    %c0_78 = arith.constant 0 : index
    %203 = vector.load %arg8[%202, %c0_77, %c0_78] : memref<8x8x384xf32, #tpu.memory_space<vmem>>, vector<1x8x384xf32>
    %204 = vector.shape_cast %203 : vector<1x8x384xf32> to vector<8x384xf32>
    %cst_79 = arith.constant dense<0.000000e+00> : vector<8x384xf32>
    %205 = tpu.matmul %201, %12, %cst_79 {dimension_numbers = #tpu.dot_dimension_numbers<[1], [0], [0], [1], [0, 0, 1, 1], [], []>} : vector<8x128xf32>, vector<128x384xf32>, vector<8x384xf32> -> vector<8x384xf32>
    %206 = vector.extract_strided_slice %204 {offsets = [0, 0], sizes = [8, 128], strides = [1, 1]} : vector<8x384xf32> to vector<8x128xf32>
    %207 = vector.extract_strided_slice %205 {offsets = [0, 0], sizes = [8, 128], strides = [1, 1]} : vector<8x384xf32> to vector<8x128xf32>
    %208 = arith.addf %206, %207 : vector<8x128xf32>
    %209 = arith.negf %208 : vector<8x128xf32>
    %210 = math.exp %209 : vector<8x128xf32>
    %cst_80 = arith.constant 1.000000e+00 : f32
    %211 = vector.broadcast %cst_80 : f32 to vector<8x128xf32>
    %212 = arith.addf %211, %210 : vector<8x128xf32>
    %213 = arith.divf %211, %212 : vector<8x128xf32>
    %214 = vector.extract_strided_slice %204 {offsets = [0, 128], sizes = [8, 128], strides = [1, 1]} : vector<8x384xf32> to vector<8x128xf32>
    %215 = vector.extract_strided_slice %205 {offsets = [0, 128], sizes = [8, 128], strides = [1, 1]} : vector<8x384xf32> to vector<8x128xf32>
    %216 = arith.addf %214, %215 : vector<8x128xf32>
    %217 = arith.negf %216 : vector<8x128xf32>
    %218 = math.exp %217 : vector<8x128xf32>
    %cst_81 = arith.constant 1.000000e+00 : f32
    %219 = vector.broadcast %cst_81 : f32 to vector<8x128xf32>
    %220 = arith.addf %219, %218 : vector<8x128xf32>
    %221 = arith.divf %219, %220 : vector<8x128xf32>
    %222 = vector.extract_strided_slice %204 {offsets = [0, 256], sizes = [8, 128], strides = [1, 1]} : vector<8x384xf32> to vector<8x128xf32>
    %223 = vector.extract_strided_slice %205 {offsets = [0, 256], sizes = [8, 128], strides = [1, 1]} : vector<8x384xf32> to vector<8x128xf32>
    %224 = arith.addf %223, %15 : vector<8x128xf32>
    %225 = arith.mulf %213, %224 : vector<8x128xf32>
    %226 = arith.addf %222, %225 : vector<8x128xf32>
    %227 = math.tanh %226 : vector<8x128xf32>
    %cst_82 = arith.constant 1.000000e+00 : f32
    %228 = vector.broadcast %cst_82 : f32 to vector<8x128xf32>
    %229 = arith.subf %228, %221 : vector<8x128xf32>
    %230 = arith.mulf %229, %227 : vector<8x128xf32>
    %231 = arith.mulf %221, %201 : vector<8x128xf32>
    %232 = arith.addf %230, %231 : vector<8x128xf32>
    %c0_83 = arith.constant 0 : index
    %c0_84 = arith.constant 0 : index
    %233 = vector.load %arg9[%c0_83, %c0_84] : memref<8x128xf32, #tpu.memory_space<vmem>>, vector<8x128xf32>
    tpu.vector_store %arg9[%c0_83, %c0_84], %232 {strides = array<i32>} : memref<8x128xf32, #tpu.memory_space<vmem>>, vector<8x128xf32>,
    %234 = arith.index_cast %c5_i32 : i32 to index
    %c0_85 = arith.constant 0 : index
    %c0_86 = arith.constant 0 : index
    %235 = vector.load %arg7[%234, %c0_85, %c0_86] : memref<8x8x128xf32, #tpu.memory_space<vmem>>, vector<1x8x128xf32>
    %236 = vector.shape_cast %235 : vector<1x8x128xf32> to vector<8x128xf32>
    %237 = vector.shape_cast %232 : vector<8x128xf32> to vector<1x8x128xf32>
    tpu.vector_store %arg7[%234, %c0_85, %c0_86], %237 {strides = array<i32>} : memref<8x8x128xf32, #tpu.memory_space<vmem>>, vector<1x8x128xf32>,
    %c6_i32 = arith.constant 6 : i32
    %c0_87 = arith.constant 0 : index
    %c0_88 = arith.constant 0 : index
    %238 = vector.load %arg9[%c0_87, %c0_88] : memref<8x128xf32, #tpu.memory_space<vmem>>, vector<8x128xf32>
    %239 = arith.index_cast %c6_i32 : i32 to index
    %c0_89 = arith.constant 0 : index
    %c0_90 = arith.constant 0 : index
    %240 = vector.load %arg8[%239, %c0_89, %c0_90] : memref<8x8x384xf32, #tpu.memory_space<vmem>>, vector<1x8x384xf32>
    %241 = vector.shape_cast %240 : vector<1x8x384xf32> to vector<8x384xf32>
    %cst_91 = arith.constant dense<0.000000e+00> : vector<8x384xf32>
    %242 = tpu.matmul %238, %12, %cst_91 {dimension_numbers = #tpu.dot_dimension_numbers<[1], [0], [0], [1], [0, 0, 1, 1], [], []>} : vector<8x128xf32>, vector<128x384xf32>, vector<8x384xf32> -> vector<8x384xf32>
    %243 = vector.extract_strided_slice %241 {offsets = [0, 0], sizes = [8, 128], strides = [1, 1]} : vector<8x384xf32> to vector<8x128xf32>
    %244 = vector.extract_strided_slice %242 {offsets = [0, 0], sizes = [8, 128], strides = [1, 1]} : vector<8x384xf32> to vector<8x128xf32>
    %245 = arith.addf %243, %244 : vector<8x128xf32>
    %246 = arith.negf %245 : vector<8x128xf32>
    %247 = math.exp %246 : vector<8x128xf32>
    %cst_92 = arith.constant 1.000000e+00 : f32
    %248 = vector.broadcast %cst_92 : f32 to vector<8x128xf32>
    %249 = arith.addf %248, %247 : vector<8x128xf32>
    %250 = arith.divf %248, %249 : vector<8x128xf32>
    %251 = vector.extract_strided_slice %241 {offsets = [0, 128], sizes = [8, 128], strides = [1, 1]} : vector<8x384xf32> to vector<8x128xf32>
    %252 = vector.extract_strided_slice %242 {offsets = [0, 128], sizes = [8, 128], strides = [1, 1]} : vector<8x384xf32> to vector<8x128xf32>
    %253 = arith.addf %251, %252 : vector<8x128xf32>
    %254 = arith.negf %253 : vector<8x128xf32>
    %255 = math.exp %254 : vector<8x128xf32>
    %cst_93 = arith.constant 1.000000e+00 : f32
    %256 = vector.broadcast %cst_93 : f32 to vector<8x128xf32>
    %257 = arith.addf %256, %255 : vector<8x128xf32>
    %258 = arith.divf %256, %257 : vector<8x128xf32>
    %259 = vector.extract_strided_slice %241 {offsets = [0, 256], sizes = [8, 128], strides = [1, 1]} : vector<8x384xf32> to vector<8x128xf32>
    %260 = vector.extract_strided_slice %242 {offsets = [0, 256], sizes = [8, 128], strides = [1, 1]} : vector<8x384xf32> to vector<8x128xf32>
    %261 = arith.addf %260, %15 : vector<8x128xf32>
    %262 = arith.mulf %250, %261 : vector<8x128xf32>
    %263 = arith.addf %259, %262 : vector<8x128xf32>
    %264 = math.tanh %263 : vector<8x128xf32>
    %cst_94 = arith.constant 1.000000e+00 : f32
    %265 = vector.broadcast %cst_94 : f32 to vector<8x128xf32>
    %266 = arith.subf %265, %258 : vector<8x128xf32>
    %267 = arith.mulf %266, %264 : vector<8x128xf32>
    %268 = arith.mulf %258, %238 : vector<8x128xf32>
    %269 = arith.addf %267, %268 : vector<8x128xf32>
    %c0_95 = arith.constant 0 : index
    %c0_96 = arith.constant 0 : index
    %270 = vector.load %arg9[%c0_95, %c0_96] : memref<8x128xf32, #tpu.memory_space<vmem>>, vector<8x128xf32>
    tpu.vector_store %arg9[%c0_95, %c0_96], %269 {strides = array<i32>} : memref<8x128xf32, #tpu.memory_space<vmem>>, vector<8x128xf32>,
    %271 = arith.index_cast %c6_i32 : i32 to index
    %c0_97 = arith.constant 0 : index
    %c0_98 = arith.constant 0 : index
    %272 = vector.load %arg7[%271, %c0_97, %c0_98] : memref<8x8x128xf32, #tpu.memory_space<vmem>>, vector<1x8x128xf32>
    %273 = vector.shape_cast %272 : vector<1x8x128xf32> to vector<8x128xf32>
    %274 = vector.shape_cast %269 : vector<8x128xf32> to vector<1x8x128xf32>
    tpu.vector_store %arg7[%271, %c0_97, %c0_98], %274 {strides = array<i32>} : memref<8x8x128xf32, #tpu.memory_space<vmem>>, vector<1x8x128xf32>,
    %c7_i32 = arith.constant 7 : i32
    %c0_99 = arith.constant 0 : index
    %c0_100 = arith.constant 0 : index
    %275 = vector.load %arg9[%c0_99, %c0_100] : memref<8x128xf32, #tpu.memory_space<vmem>>, vector<8x128xf32>
    %276 = arith.index_cast %c7_i32 : i32 to index
    %c0_101 = arith.constant 0 : index
    %c0_102 = arith.constant 0 : index
    %277 = vector.load %arg8[%276, %c0_101, %c0_102] : memref<8x8x384xf32, #tpu.memory_space<vmem>>, vector<1x8x384xf32>
    %278 = vector.shape_cast %277 : vector<1x8x384xf32> to vector<8x384xf32>
    %cst_103 = arith.constant dense<0.000000e+00> : vector<8x384xf32>
    %279 = tpu.matmul %275, %12, %cst_103 {dimension_numbers = #tpu.dot_dimension_numbers<[1], [0], [0], [1], [0, 0, 1, 1], [], []>} : vector<8x128xf32>, vector<128x384xf32>, vector<8x384xf32> -> vector<8x384xf32>
    %280 = vector.extract_strided_slice %278 {offsets = [0, 0], sizes = [8, 128], strides = [1, 1]} : vector<8x384xf32> to vector<8x128xf32>
    %281 = vector.extract_strided_slice %279 {offsets = [0, 0], sizes = [8, 128], strides = [1, 1]} : vector<8x384xf32> to vector<8x128xf32>
    %282 = arith.addf %280, %281 : vector<8x128xf32>
    %283 = arith.negf %282 : vector<8x128xf32>
    %284 = math.exp %283 : vector<8x128xf32>
    %cst_104 = arith.constant 1.000000e+00 : f32
    %285 = vector.broadcast %cst_104 : f32 to vector<8x128xf32>
    %286 = arith.addf %285, %284 : vector<8x128xf32>
    %287 = arith.divf %285, %286 : vector<8x128xf32>
    %288 = vector.extract_strided_slice %278 {offsets = [0, 128], sizes = [8, 128], strides = [1, 1]} : vector<8x384xf32> to vector<8x128xf32>
    %289 = vector.extract_strided_slice %279 {offsets = [0, 128], sizes = [8, 128], strides = [1, 1]} : vector<8x384xf32> to vector<8x128xf32>
    %290 = arith.addf %288, %289 : vector<8x128xf32>
    %291 = arith.negf %290 : vector<8x128xf32>
    %292 = math.exp %291 : vector<8x128xf32>
    %cst_105 = arith.constant 1.000000e+00 : f32
    %293 = vector.broadcast %cst_105 : f32 to vector<8x128xf32>
    %294 = arith.addf %293, %292 : vector<8x128xf32>
    %295 = arith.divf %293, %294 : vector<8x128xf32>
    %296 = vector.extract_strided_slice %278 {offsets = [0, 256], sizes = [8, 128], strides = [1, 1]} : vector<8x384xf32> to vector<8x128xf32>
    %297 = vector.extract_strided_slice %279 {offsets = [0, 256], sizes = [8, 128], strides = [1, 1]} : vector<8x384xf32> to vector<8x128xf32>
    %298 = arith.addf %297, %15 : vector<8x128xf32>
    %299 = arith.mulf %287, %298 : vector<8x128xf32>
    %300 = arith.addf %296, %299 : vector<8x128xf32>
    %301 = math.tanh %300 : vector<8x128xf32>
    %cst_106 = arith.constant 1.000000e+00 : f32
    %302 = vector.broadcast %cst_106 : f32 to vector<8x128xf32>
    %303 = arith.subf %302, %295 : vector<8x128xf32>
    %304 = arith.mulf %303, %301 : vector<8x128xf32>
    %305 = arith.mulf %295, %275 : vector<8x128xf32>
    %306 = arith.addf %304, %305 : vector<8x128xf32>
    %c0_107 = arith.constant 0 : index
    %c0_108 = arith.constant 0 : index
    %307 = vector.load %arg9[%c0_107, %c0_108] : memref<8x128xf32, #tpu.memory_space<vmem>>, vector<8x128xf32>
    tpu.vector_store %arg9[%c0_107, %c0_108], %306 {strides = array<i32>} : memref<8x128xf32, #tpu.memory_space<vmem>>, vector<8x128xf32>,
    %308 = arith.index_cast %c7_i32 : i32 to index
    %c0_109 = arith.constant 0 : index
    %c0_110 = arith.constant 0 : index
    %309 = vector.load %arg7[%308, %c0_109, %c0_110] : memref<8x8x128xf32, #tpu.memory_space<vmem>>, vector<1x8x128xf32>
    %310 = vector.shape_cast %309 : vector<1x8x128xf32> to vector<8x128xf32>
    %311 = vector.shape_cast %306 : vector<8x128xf32> to vector<1x8x128xf32>
    tpu.vector_store %arg7[%308, %c0_109, %c0_110], %311 {strides = array<i32>} : memref<8x8x128xf32, #tpu.memory_space<vmem>>, vector<1x8x128xf32>,
    %c8_i32 = arith.constant 8 : i32
    return
  }
  func.func @transform_0(%arg0: i32, %arg1: i32) -> (i32, i32, i32) {
    %c0_i32 = arith.constant 0 : i32
    %c0_i32_0 = arith.constant 0 : i32
    return %arg1, %arg0, %c0_i32 : i32, i32, i32
  }
  func.func @transform_1(%arg0: i32, %arg1: i32) -> (i32, i32) {
    %c0_i32 = arith.constant 0 : i32
    %c0_i32_0 = arith.constant 0 : i32
    %c0_i32_1 = arith.constant 0 : i32
    return %c0_i32, %c0_i32_0 : i32, i32
  }
  func.func @transform_2(%arg0: i32, %arg1: i32) -> (i32, i32) {
    %c0_i32 = arith.constant 0 : i32
    %c0_i32_0 = arith.constant 0 : i32
    %c0_i32_1 = arith.constant 0 : i32
    return %c0_i32, %c0_i32_0 : i32, i32
  }
  func.func @transform_3(%arg0: i32, %arg1: i32) -> (i32, i32) {
    %c0_i32 = arith.constant 0 : i32
    %c0_i32_0 = arith.constant 0 : i32
    %c0_i32_1 = arith.constant 0 : i32
    return %c0_i32, %c0_i32_0 : i32, i32
  }
  func.func @transform_4(%arg0: i32, %arg1: i32) -> (i32, i32) {
    %c0_i32 = arith.constant 0 : i32
    %c0_i32_0 = arith.constant 0 : i32
    %c0_i32_1 = arith.constant 0 : i32
    return %c0_i32, %c0_i32_0 : i32, i32
  }
  func.func @transform_5(%arg0: i32, %arg1: i32) -> (i32, i32, i32) {
    %c0_i32 = arith.constant 0 : i32
    %c0_i32_0 = arith.constant 0 : i32
    return %arg1, %arg0, %c0_i32 : i32, i32, i32
  }
}

</mosaic_0001>

<llo_original>
// kernel: tpu_custom_call.1
$region0: #{tpu_custom_call.1}
  #allocation0 [shape = 'u32[]', space=smem, size = 0x4, offset = 0x4, fixed_abs, tag = 'smem constant byte address 0x4 - core index']
  #allocation1 [shape = 'u32[144,128]{1,0:T(1,128)}', space=vmem, size = 0x12000, scoped, tag = 'internal scratch']
  #allocation2 [shape = 'f32[8,8,384]{2,1,0:T(8,128)}', space=vmem, size = 0x18000, scoped, tag = 'scratch operand']
  #allocation3 [shape = 'f32[8,128]{1,0:T(8,128)}', space=vmem, size = 0x1000, scoped, tag = 'scratch operand']
  %s0 = inlined_call_operand.hbm [shape: f32[8,8,128], index: 0, kind: input, shape index: {}]
  %s1 = inlined_call_operand.hbm [shape: f32[128,384], index: 1, kind: input, shape index: {}]
  %s2 = inlined_call_operand.hbm [shape: f32[1,384], index: 2, kind: input, shape index: {}]
  %s3 = inlined_call_operand.hbm [shape: f32[128,384], index: 3, kind: input, shape index: {}]
  %s4 = inlined_call_operand.hbm [shape: f32[1,128], index: 4, kind: input, shape index: {}]
  %s5 = inlined_call_operand.hbm [shape: f32[8,8,128], index: 5, kind: output, shape index: {}]
  %s6 = sld [smem:[#allocation0]]
  $region54: #{tpu_custom_call.1} parent=0
    _
  %s8 = ssub.s32 1, %s6
  %s9 = scalar_select 0, %s8, %s6
  $region1: #{tpu_custom_call.1} parent=0
    #allocation4 [shape = 'u8[32768]{0}', space=vmem, size = 0x8000, scoped, tag = 'input window, operand 0, single buffered']
    #allocation5 [shape = 's32[1]{0}', space=sflag, size = 0x4, scoped, tag = 'scoped memory for tpu_custom_call.1']
    #allocation6 [shape = 's32[1]{0}', space=sflag, size = 0x4, scoped, tag = 'scoped memory for tpu_custom_call.1']
    #allocation7 [shape = 'u8[196608]{0}', space=vmem, size = 0x30000, scoped, tag = 'input window, operand 1, single buffered']
    #allocation8 [shape = 's32[1]{0}', space=sflag, size = 0x4, scoped, tag = 'scoped memory for tpu_custom_call.1']
    #allocation9 [shape = 'u8[1536]{0}', space=vmem, size = 0x800, scoped, tag = 'input window, operand 2, single buffered']
    #allocation10 [shape = 'u8[196608]{0}', space=vmem, size = 0x30000, scoped, tag = 'input window, operand 3, single buffered']
    #allocation11 [shape = 's32[1]{0}', space=sflag, size = 0x4, scoped, tag = 'scoped memory for tpu_custom_call.1']
    #allocation12 [shape = 'u8[512]{0}', space=vmem, size = 0x400, scoped, tag = 'input window, operand 4, single buffered']
    #allocation13 [shape = 'u8[32768]{0}', space=vmem, size = 0x8000, scoped, tag = 'output window, operand 0, single buffered']
    %10 = vsyncpa [#allocation5], 0
    %11 = vsyncpa [#allocation8], 0
    %12 = vsyncpa [#allocation11], 0
    %13 = vsyncpa [#allocation6], 0
    // Predicated region
    $region2: #{tpu_custom_call.1} parent=1 // pred_check
      _
    $region3: #{tpu_custom_call.1} parent=1 // pred_check_branch
      %15 = sbr.rel (0) target = $region5
    $region4: #{tpu_custom_call.1} parent=1 // pred_region
      %s17 = ssub.s32 1024, 1024
      %18 = vsyncadd [#allocation5], %s17
      %s19 = sshll.u32 [#allocation4], 4
      %s20 = int_to_ptr.vmem [resolvable:$true] %s19
      %25 = dma.hbm_to_vmem [thread:$0]  %s0, 1024, %s20, [#allocation5], 128, 128, 8
    $region5: #{tpu_custom_call.1} parent=1 // pred_fallthru
      _
    // Predicated region
    $region6: #{tpu_custom_call.1} parent=1 // pred_check
      _
    $region7: #{tpu_custom_call.1} parent=1 // pred_check_branch
      %27 = sbr.rel (0) target = $region9
    $region8: #{tpu_custom_call.1} parent=1 // pred_region
      %s29 = ssub.s32 6144, 6144
      %30 = vsyncadd [#allocation8], %s29
      %s31 = sshll.u32 [#allocation7], 4
      %s32 = int_to_ptr.vmem [resolvable:$true] %s31
      %37 = dma.hbm_to_vmem [thread:$0]  %s1, 6144, %s32, [#allocation8], 384, 384, 24
    $region9: #{tpu_custom_call.1} parent=1 // pred_fallthru
      _
    // Predicated region
    $region10: #{tpu_custom_call.1} parent=1 // pred_check
      _
    $region11: #{tpu_custom_call.1} parent=1 // pred_check_branch
      %39 = sbr.rel (0) target = $region13
    $region12: #{tpu_custom_call.1} parent=1 // pred_region
      %s41 = ssub.s32 48, 48
      %42 = vsyncadd [#allocation8], %s41
      %s44 = sshll.u32 [#allocation9], 4
      %s45 = int_to_ptr.vmem [resolvable:$true] %s44
      %47 = dma.hbm_to_vmem [thread:$0]  %s2, 48, %s45, [#allocation8]
    $region13: #{tpu_custom_call.1} parent=1 // pred_fallthru
      _
    // Predicated region
    $region14: #{tpu_custom_call.1} parent=1 // pred_check
      _
    $region15: #{tpu_custom_call.1} parent=1 // pred_check_branch
      %49 = sbr.rel (0) target = $region17
    $region16: #{tpu_custom_call.1} parent=1 // pred_region
      %s51 = ssub.s32 6144, 6144
      %52 = vsyncadd [#allocation11], %s51
      %s53 = sshll.u32 [#allocation10], 4
      %s54 = int_to_ptr.vmem [resolvable:$true] %s53
      %59 = dma.hbm_to_vmem [thread:$0]  %s3, 6144, %s54, [#allocation11], 384, 384, 24
    $region17: #{tpu_custom_call.1} parent=1 // pred_fallthru
      _
    // Predicated region
    $region18: #{tpu_custom_call.1} parent=1 // pred_check
      _
    $region19: #{tpu_custom_call.1} parent=1 // pred_check_branch
      %61 = sbr.rel (0) target = $region21
    $region20: #{tpu_custom_call.1} parent=1 // pred_region
      %s63 = ssub.s32 16, 16
      %64 = vsyncadd [#allocation11], %s63
      %s66 = sshll.u32 [#allocation12], 4
      %s67 = int_to_ptr.vmem [resolvable:$true] %s66
      %69 = dma.hbm_to_vmem [thread:$0]  %s4, 16, %s67, [#allocation11]
    $region21: #{tpu_custom_call.1} parent=1 // pred_fallthru
      _
    // Predicated region
    $region22: #{tpu_custom_call.1} parent=1 // pred_check
      _
    $region23: #{tpu_custom_call.1} parent=1 // pred_check_branch
      %71 = sbr.rel (0) target = $region25
    $region24: #{tpu_custom_call.1} parent=1 // pred_region
      %72 = dma.done [#allocation5], 1024
    $region25: #{tpu_custom_call.1} parent=1 // pred_fallthru
      _
    // Predicated region
    $region26: #{tpu_custom_call.1} parent=1 // pred_check
      _
    $region27: #{tpu_custom_call.1} parent=1 // pred_check_branch
      %74 = sbr.rel (0) target = $region29
    $region28: #{tpu_custom_call.1} parent=1 // pred_region
      %75 = dma.done [#allocation8], 6144
    $region29: #{tpu_custom_call.1} parent=1 // pred_fallthru
      _
    // Predicated region
    $region30: #{tpu_custom_call.1} parent=1 // pred_check
      _
    $region31: #{tpu_custom_call.1} parent=1 // pred_check_branch
      %77 = sbr.rel (0) target = $region33
    $region32: #{tpu_custom_call.1} parent=1 // pred_region
      %78 = dma.done [#allocation8], 48
    $region33: #{tpu_custom_call.1} parent=1 // pred_fallthru
      _
    // Predicated region
    $region34: #{tpu_custom_call.1} parent=1 // pred_check
      _
    $region35: #{tpu_custom_call.1} parent=1 // pred_check_branch
      %80 = sbr.rel (0) target = $region37
    $region36: #{tpu_custom_call.1} parent=1 // pred_region
      %81 = dma.done [#allocation11], 6144
    $region37: #{tpu_custom_call.1} parent=1 // pred_fallthru
      _
    // Predicated region
    $region38: #{tpu_custom_call.1} parent=1 // pred_check
      _
    $region39: #{tpu_custom_call.1} parent=1 // pred_check_branch
      %83 = sbr.rel (0) target = $region41
    $region40: #{tpu_custom_call.1} parent=1 // pred_region
      %84 = dma.done [#allocation11], 16
    $region41: #{tpu_custom_call.1} parent=1 // pred_fallthru
      _
    %p85 = scmp.eq.s32.totalorder 0, 0
    // Predicated region
    $region42: #{tpu_custom_call.1} parent=1 // pred_check
      %p86 = pneg %p85
    $region43: #{tpu_custom_call.1} parent=1 // pred_check_branch
      %88 = sbr.rel (%p86) target = $region45
    $region44: #{tpu_custom_call.1} parent=1 // pred_region
      %89 = vst [vmem:[#allocation3] sm:$0xff] 0.0
    $region45: #{tpu_custom_call.1} parent=1 // pred_fallthru
      _
    %v90 = vld [vmem:[#allocation4] sm:$0xff]
    %v91 = vld [vmem:[#allocation4 + $0x8] sm:$0xff]
    %v92 = vld [vmem:[#allocation4 + $0x10] sm:$0xff]
    %v93 = vld [vmem:[#allocation4 + $0x18] sm:$0xff]
    %v94 = vld [vmem:[#allocation4 + $0x20] sm:$0xff]
    %v95 = vld [vmem:[#allocation4 + $0x28] sm:$0xff]
    %v96 = vld [vmem:[#allocation4 + $0x30] sm:$0xff]
    %v97 = vld [vmem:[#allocation4 + $0x38] sm:$0xff]
    %v98 = vld [vmem:[#allocation7] sm:$0xff]
    %v99 = vld [vmem:[#allocation7 + $0x8] sm:$0xff]
    %v100 = vld [vmem:[#allocation7 + $0x10] sm:$0xff]
    %v101 = vld [vmem:[#allocation7 + $0x18] sm:$0xff]
    %v102 = vld [vmem:[#allocation7 + $0x20] sm:$0xff]
    %v103 = vld [vmem:[#allocation7 + $0x28] sm:$0xff]
    %v104 = vld [vmem:[#allocation7 + $0x30] sm:$0xff]
    %v105 = vld [vmem:[#allocation7 + $0x38] sm:$0xff]
    %v106 = vld [vmem:[#allocation7 + $0x40] sm:$0xff]
    %v107 = vld [vmem:[#allocation7 + $0x48] sm:$0xff]
    %v108 = vld [vmem:[#allocation7 + $0x50] sm:$0xff]
    %v109 = vld [vmem:[#allocation7 + $0x58] sm:$0xff]
    %v110 = vld [vmem:[#allocation7 + $0x60] sm:$0xff]
    %v111 = vld [vmem:[#allocation7 + $0x68] sm:$0xff]
    %v112 = vld [vmem:[#allocation7 + $0x70] sm:$0xff]
    %v113 = vld [vmem:[#allocation7 + $0x78] sm:$0xff]
    %v114 = vld [vmem:[#allocation7 + $0x80] sm:$0xff]
    %v115 = vld [vmem:[#allocation7 + $0x88] sm:$0xff]
    %v116 = vld [vmem:[#allocation7 + $0x90] sm:$0xff]
    %v117 = vld [vmem:[#allocation7 + $0x98] sm:$0xff]
    %v118 = vld [vmem:[#allocation7 + $0xa0] sm:$0xff]
    %v119 = vld [vmem:[#allocation7 + $0xa8] sm:$0xff]
    %v120 = vld [vmem:[#allocation7 + $0xb0] sm:$0xff]
    %v121 = vld [vmem:[#allocation7 + $0xb8] sm:$0xff]
    %v122 = vld [vmem:[#allocation7 + $0xc0] sm:$0xff]
    %v123 = vld [vmem:[#allocation7 + $0xc8] sm:$0xff]
    %v124 = vld [vmem:[#allocation7 + $0xd0] sm:$0xff]
    %v125 = vld [vmem:[#allocation7 + $0xd8] sm:$0xff]
    %v126 = vld [vmem:[#allocation7 + $0xe0] sm:$0xff]
    %v127 = vld [vmem:[#allocation7 + $0xe8] sm:$0xff]
    %v128 = vld [vmem:[#allocation7 + $0xf0] sm:$0xff]
    %v129 = vld [vmem:[#allocation7 + $0xf8] sm:$0xff]
    %v130 = vld [vmem:[#allocation7 + $0x100] sm:$0xff]
    %v131 = vld [vmem:[#allocation7 + $0x108] sm:$0xff]
    %v132 = vld [vmem:[#allocation7 + $0x110] sm:$0xff]
    %v133 = vld [vmem:[#allocation7 + $0x118] sm:$0xff]
    %v134 = vld [vmem:[#allocation7 + $0x120] sm:$0xff]
    %v135 = vld [vmem:[#allocation7 + $0x128] sm:$0xff]
    %v136 = vld [vmem:[#allocation7 + $0x130] sm:$0xff]
    %v137 = vld [vmem:[#allocation7 + $0x138] sm:$0xff]
    %v138 = vld [vmem:[#allocation7 + $0x140] sm:$0xff]
    %v139 = vld [vmem:[#allocation7 + $0x148] sm:$0xff]
    %v140 = vld [vmem:[#allocation7 + $0x150] sm:$0xff]
    %v141 = vld [vmem:[#allocation7 + $0x158] sm:$0xff]
    %v142 = vld [vmem:[#allocation7 + $0x160] sm:$0xff]
    %v143 = vld [vmem:[#allocation7 + $0x168] sm:$0xff]
    %v144 = vld [vmem:[#allocation7 + $0x170] sm:$0xff]
    %v145 = vld [vmem:[#allocation7 + $0x178] sm:$0xff]
    %v146 = vld [vmem:[#allocation9] sm:$0x7]
    %v148 = vlaneseq
    %v149 = vshrl.u32 %v148, 7
    %v150 = vsub.s32 0, %v149
    %v151 = vrot.slane %v146, %v150
    %v152 = vlaneseq
    %v153 = vshrl.u32 %v152, 7
    %v154 = vsub.s32 1, %v153
    %v155 = vrot.slane %v146, %v154
    %v156 = vlaneseq
    %v157 = vshrl.u32 %v156, 7
    %v158 = vsub.s32 2, %v157
    %v159 = vrot.slane %v146, %v158
    %163 = vmatprep.subr.mxu0 %v99
    %164 = vmatpush1.msra.mxu0 %v98
    %165 = vmatprep.subr.mxu0 %v102
    %166 = vmatpush1.msra.mxu0 %v101
    %167 = vmatprep.subr.mxu0 %v105
    %168 = vmatpush1.msra.mxu0 %v104
    %169 = vmatprep.subr.mxu0 %v108
    %170 = vmatpush1.msra.mxu0 %v107
    %171 = vmatprep.subr.mxu0 %v111
    %172 = vmatpush1.msra.mxu0 %v110
    %173 = vmatprep.subr.mxu0 %v114
    %174 = vmatpush1.msra.mxu0 %v113
    %175 = vmatprep.subr.mxu0 %v117
    %176 = vmatpush1.msra.mxu0 %v116
    %177 = vmatprep.subr.mxu0 %v120
    %178 = vmatpush1.msra.mxu0 %v119
    %179 = vmatprep.subr.mxu0 %v123
    %180 = vmatpush1.msra.mxu0 %v122
    %181 = vmatprep.subr.mxu0 %v126
    %182 = vmatpush1.msra.mxu0 %v125
    %183 = vmatprep.subr.mxu0 %v129
    %184 = vmatpush1.msra.mxu0 %v128
    %185 = vmatprep.subr.mxu0 %v132
    %186 = vmatpush1.msra.mxu0 %v131
    %187 = vmatprep.subr.mxu0 %v135
    %188 = vmatpush1.msra.mxu0 %v134
    %189 = vmatprep.subr.mxu0 %v138
    %190 = vmatpush1.msra.mxu0 %v137
    %191 = vmatprep.subr.mxu0 %v141
    %192 = vmatpush1.msra.mxu0 %v140
    %193 = vmatprep.subr.mxu0 %v144
    %194 = vmatpush1.msra.mxu0 %v143
    %195 = vmatprep.subr.mxu0 0.0
    %196 = vmatpush1.msra.mxu0 0.0
    %197 = vmatprep.subr.mxu0 0.0
    %198 = vmatpush1.msra.mxu0 0.0
    %199 = vmatprep.subr.mxu0 0.0
    %200 = vmatpush1.msra.mxu0 0.0
    %201 = vmatprep.subr.mxu0 0.0
    %202 = vmatpush1.msra.mxu0 0.0
    %203 = vmatprep.subr.mxu0 0.0
    %204 = vmatpush1.msra.mxu0 0.0
    %205 = vmatprep.subr.mxu0 0.0
    %206 = vmatpush1.msra.mxu0 0.0
    %207 = vmatprep.subr.mxu0 0.0
    %208 = vmatpush1.msra.mxu0 0.0
    %209 = vmatprep.subr.mxu0 0.0
    %210 = vmatpush1.msra.mxu0 0.0
    %211 = vmatprep.subr.mxu0 0.0
    %212 = vmatpush1.msra.mxu0 0.0
    %213 = vmatprep.subr.mxu0 0.0
    %214 = vmatpush1.msra.mxu0 0.0
    %215 = vmatprep.subr.mxu0 0.0
    %216 = vmatpush1.msra.mxu0 0.0
    %217 = vmatprep.subr.mxu0 0.0
    %218 = vmatpush1.msra.mxu0 0.0
    %219 = vmatprep.subr.mxu0 0.0
    %220 = vmatpush1.msra.mxu0 0.0
    %221 = vmatprep.subr.mxu0 0.0
    %222 = vmatpush1.msra.mxu0 0.0
    %223 = vmatprep.subr.mxu0 0.0
    %224 = vmatpush1.msra.mxu0 0.0
    %225 = vmatprep.subr.mxu0 0.0
    %226 = vmatpush1.msra.mxu0 0.0
    %227 = vmatprep.mubr.f32.mxu0 0.0
    %228 = vmatmul.mubr.f32.gmra.mrb[0].mxu0 %v90
    %v229 = vpop.f32.mrb[0].mxu0
    %v230 = vadd.f32 %v151, %v229
    %v231 = vpop.f32.mrb[0].mxu0
    %v232 = vadd.f32 %v155, %v231
    %233 = vmatprep.mubr.f32.mxu0 0.0
    %234 = vmatmul.mubr.f32.gmra.mrb[0].mxu0 %v91
    %v235 = vpop.f32.mrb[0].mxu0
    %v236 = vadd.f32 %v151, %v235
    %v237 = vpop.f32.mrb[0].mxu0
    %v238 = vadd.f32 %v155, %v237
    %239 = vmatprep.mubr.f32.mxu0 0.0
    %240 = vmatmul.mubr.f32.gmra.mrb[0].mxu0 %v92
    %v241 = vpop.f32.mrb[0].mxu0
    %v242 = vadd.f32 %v151, %v241
    %v243 = vpop.f32.mrb[0].mxu0
    %v244 = vadd.f32 %v155, %v243
    %245 = vmatprep.mubr.f32.mxu0 0.0
    %246 = vmatmul.mubr.f32.gmra.mrb[0].mxu0 %v93
    %v247 = vpop.f32.mrb[0].mxu0
    %v248 = vadd.f32 %v151, %v247
    %v249 = vpop.f32.mrb[0].mxu0
    %v250 = vadd.f32 %v155, %v249
    %251 = vmatprep.mubr.f32.mxu0 0.0
    %252 = vmatmul.mubr.f32.gmra.mrb[0].mxu0 %v94
    %v253 = vpop.f32.mrb[0].mxu0
    %v254 = vadd.f32 %v151, %v253
    %v255 = vpop.f32.mrb[0].mxu0
    %v256 = vadd.f32 %v155, %v255
    %257 = vmatprep.mubr.f32.mxu0 0.0
    %258 = vmatmul.mubr.f32.gmra.mrb[0].mxu0 %v95
    %v259 = vpop.f32.mrb[0].mxu0
    %v260 = vadd.f32 %v151, %v259
    %v261 = vpop.f32.mrb[0].mxu0
    %v262 = vadd.f32 %v155, %v261
    %263 = vmatprep.mubr.f32.mxu0 0.0
    %264 = vmatmul.mubr.f32.gmra.mrb[0].mxu0 %v96
    %v265 = vpop.f32.mrb[0].mxu0
    %v266 = vadd.f32 %v151, %v265
    %v267 = vpop.f32.mrb[0].mxu0
    %v268 = vadd.f32 %v155, %v267
    %269 = vmatprep.mubr.f32.mxu0 0.0
    %270 = vmatmul.mubr.f32.gmra.mrb[0].mxu0 %v97
    %v271 = vpop.f32.mrb[0].mxu0
    %v272 = vadd.f32 %v151, %v271
    %v273 = vpop.f32.mrb[0].mxu0
    %v274 = vadd.f32 %v155, %v273
    %275 = vdwg.mxu0
    %276 = vmatprep.subr.mxu0 0.0
    %277 = vmatpush1.msra.mxu0 %v100
    %278 = vmatprep.subr.mxu0 0.0
    %279 = vmatpush1.msra.mxu0 %v103
    %280 = vmatprep.subr.mxu0 0.0
    %281 = vmatpush1.msra.mxu0 %v106
    %282 = vmatprep.subr.mxu0 0.0
    %283 = vmatpush1.msra.mxu0 %v109
    %284 = vmatprep.subr.mxu0 0.0
    %285 = vmatpush1.msra.mxu0 %v112
    %286 = vmatprep.subr.mxu0 0.0
    %287 = vmatpush1.msra.mxu0 %v115
    %288 = vmatprep.subr.mxu0 0.0
    %289 = vmatpush1.msra.mxu0 %v118
    %290 = vmatprep.subr.mxu0 0.0
    %291 = vmatpush1.msra.mxu0 %v121
    %292 = vmatprep.subr.mxu0 0.0
    %293 = vmatpush1.msra.mxu0 %v124
    %294 = vmatprep.subr.mxu0 0.0
    %295 = vmatpush1.msra.mxu0 %v127
    %296 = vmatprep.subr.mxu0 0.0
    %297 = vmatpush1.msra.mxu0 %v130
    %298 = vmatprep.subr.mxu0 0.0
    %299 = vmatpush1.msra.mxu0 %v133
    %300 = vmatprep.subr.mxu0 0.0
    %301 = vmatpush1.msra.mxu0 %v136
    %302 = vmatprep.subr.mxu0 0.0
    %303 = vmatpush1.msra.mxu0 %v139
    %304 = vmatprep.subr.mxu0 0.0
    %305 = vmatpush1.msra.mxu0 %v142
    %306 = vmatprep.subr.mxu0 0.0
    %307 = vmatpush1.msra.mxu0 %v145
    %308 = vmatprep.subr.mxu0 0.0
    %309 = vmatpush1.msra.mxu0 0.0
    %310 = vmatprep.subr.mxu0 0.0
    %311 = vmatpush1.msra.mxu0 0.0
    %312 = vmatprep.subr.mxu0 0.0
    %313 = vmatpush1.msra.mxu0 0.0
    %314 = vmatprep.subr.mxu0 0.0
    %315 = vmatpush1.msra.mxu0 0.0
    %316 = vmatprep.subr.mxu0 0.0
    %317 = vmatpush1.msra.mxu0 0.0
    %318 = vmatprep.subr.mxu0 0.0
    %319 = vmatpush1.msra.mxu0 0.0
    %320 = vmatprep.subr.mxu0 0.0
    %321 = vmatpush1.msra.mxu0 0.0
    %322 = vmatprep.subr.mxu0 0.0
    %323 = vmatpush1.msra.mxu0 0.0
    %324 = vmatprep.subr.mxu0 0.0
    %325 = vmatpush1.msra.mxu0 0.0
    %326 = vmatprep.subr.mxu0 0.0
    %327 = vmatpush1.msra.mxu0 0.0
    %328 = vmatprep.subr.mxu0 0.0
    %329 = vmatpush1.msra.mxu0 0.0
    %330 = vmatprep.subr.mxu0 0.0
    %331 = vmatpush1.msra.mxu0 0.0
    %332 = vmatprep.subr.mxu0 0.0
    %333 = vmatpush1.msra.mxu0 0.0
    %334 = vmatprep.subr.mxu0 0.0
    %335 = vmatpush1.msra.mxu0 0.0
    %336 = vmatprep.subr.mxu0 0.0
    %337 = vmatpush1.msra.mxu0 0.0
    %338 = vmatprep.subr.mxu0 0.0
    %339 = vmatpush1.msra.mxu0 0.0
    %340 = vmatprep.mubr.f32.mxu0 0.0
    %341 = vmatmul.mubr.f32.gmra.mrb[0].mxu0 %v90
    %v342 = vpop.f32.mrb[0].mxu0
    %v343 = vadd.f32 %v159, %v342
    %v344 = vpop.f32.mrb[0].mxu0
    %345 = vmatprep.mubr.f32.mxu0 0.0
    %346 = vmatmul.mubr.f32.gmra.mrb[0].mxu0 %v91
    %v347 = vpop.f32.mrb[0].mxu0
    %v348 = vadd.f32 %v159, %v347
    %v349 = vpop.f32.mrb[0].mxu0
    %350 = vmatprep.mubr.f32.mxu0 0.0
    %351 = vmatmul.mubr.f32.gmra.mrb[0].mxu0 %v92
    %v352 = vpop.f32.mrb[0].mxu0
    %v353 = vadd.f32 %v159, %v352
    %v354 = vpop.f32.mrb[0].mxu0
    %355 = vmatprep.mubr.f32.mxu0 0.0
    %356 = vmatmul.mubr.f32.gmra.mrb[0].mxu0 %v93
    %v357 = vpop.f32.mrb[0].mxu0
    %v358 = vadd.f32 %v159, %v357
    %v359 = vpop.f32.mrb[0].mxu0
    %360 = vmatprep.mubr.f32.mxu0 0.0
    %361 = vmatmul.mubr.f32.gmra.mrb[0].mxu0 %v94
    %v362 = vpop.f32.mrb[0].mxu0
    %v363 = vadd.f32 %v159, %v362
    %v364 = vpop.f32.mrb[0].mxu0
    %365 = vmatprep.mubr.f32.mxu0 0.0
    %366 = vmatmul.mubr.f32.gmra.mrb[0].mxu0 %v95
    %v367 = vpop.f32.mrb[0].mxu0
    %v368 = vadd.f32 %v159, %v367
    %v369 = vpop.f32.mrb[0].mxu0
    %370 = vmatprep.mubr.f32.mxu0 0.0
    %371 = vmatmul.mubr.f32.gmra.mrb[0].mxu0 %v96
    %v372 = vpop.f32.mrb[0].mxu0
    %v373 = vadd.f32 %v159, %v372
    %v374 = vpop.f32.mrb[0].mxu0
    %375 = vmatprep.mubr.f32.mxu0 0.0
    %376 = vmatmul.mubr.f32.gmra.mrb[0].mxu0 %v97
    %v377 = vpop.f32.mrb[0].mxu0
    %v378 = vadd.f32 %v159, %v377
    %v379 = vpop.f32.mrb[0].mxu0
    %380 = vdwg.mxu0
    %381 = vst [vmem:[#allocation2] sm:$0xff] %v230
    %382 = vst [vmem:[#allocation2 + $0x8] sm:$0xff] %v232
    %383 = vst [vmem:[#allocation2 + $0x10] sm:$0xff] %v343
    %384 = vst [vmem:[#allocation2 + $0x18] sm:$0xff] %v236
    %385 = vst [vmem:[#allocation2 + $0x20] sm:$0xff] %v238
    %386 = vst [vmem:[#allocation2 + $0x28] sm:$0xff] %v348
    %387 = vst [vmem:[#allocation2 + $0x30] sm:$0xff] %v242
    %388 = vst [vmem:[#allocation2 + $0x38] sm:$0xff] %v244
    %389 = vst [vmem:[#allocation2 + $0x40] sm:$0xff] %v353
    %390 = vst [vmem:[#allocation2 + $0x48] sm:$0xff] %v248
    %391 = vst [vmem:[#allocation2 + $0x50] sm:$0xff] %v250
    %392 = vst [vmem:[#allocation2 + $0x58] sm:$0xff] %v358
    %393 = vst [vmem:[#allocation2 + $0x60] sm:$0xff] %v254
    %394 = vst [vmem:[#allocation2 + $0x68] sm:$0xff] %v256
    %395 = vst [vmem:[#allocation2 + $0x70] sm:$0xff] %v363
    %396 = vst [vmem:[#allocation2 + $0x78] sm:$0xff] %v260
    %397 = vst [vmem:[#allocation2 + $0x80] sm:$0xff] %v262
    %398 = vst [vmem:[#allocation2 + $0x88] sm:$0xff] %v368
    %399 = vst [vmem:[#allocation2 + $0x90] sm:$0xff] %v266
    %400 = vst [vmem:[#allocation2 + $0x98] sm:$0xff] %v268
    %401 = vst [vmem:[#allocation2 + $0xa0] sm:$0xff] %v373
    %402 = vst [vmem:[#allocation2 + $0xa8] sm:$0xff] %v272
    %403 = vst [vmem:[#allocation2 + $0xb0] sm:$0xff] %v274
    %404 = vst [vmem:[#allocation2 + $0xb8] sm:$0xff] %v378
    %v405 = vld [vmem:[#allocation10] sm:$0xff]
    %v406 = vld [vmem:[#allocation10 + $0x8] sm:$0xff]
    %v407 = vld [vmem:[#allocation10 + $0x10] sm:$0xff]
    %v408 = vld [vmem:[#allocation10 + $0x18] sm:$0xff]
    %v409 = vld [vmem:[#allocation10 + $0x20] sm:$0xff]
    %v410 = vld [vmem:[#allocation10 + $0x28] sm:$0xff]
    %v411 = vld [vmem:[#allocation10 + $0x30] sm:$0xff]
    %v412 = vld [vmem:[#allocation10 + $0x38] sm:$0xff]
    %v413 = vld [vmem:[#allocation10 + $0x40] sm:$0xff]
    %v414 = vld [vmem:[#allocation10 + $0x48] sm:$0xff]
    %v415 = vld [vmem:[#allocation10 + $0x50] sm:$0xff]
    %v416 = vld [vmem:[#allocation10 + $0x58] sm:$0xff]
    %v417 = vld [vmem:[#allocation10 + $0x60] sm:$0xff]
    %v418 = vld [vmem:[#allocation10 + $0x68] sm:$0xff]
    %v419 = vld [vmem:[#allocation10 + $0x70] sm:$0xff]
    %v420 = vld [vmem:[#allocation10 + $0x78] sm:$0xff]
    %v421 = vld [vmem:[#allocation10 + $0x80] sm:$0xff]
    %v422 = vld [vmem:[#allocation10 + $0x88] sm:$0xff]
    %v423 = vld [vmem:[#allocation10 + $0x90] sm:$0xff]
    %v424 = vld [vmem:[#allocation10 + $0x98] sm:$0xff]
    %v425 = vld [vmem:[#allocation10 + $0xa0] sm:$0xff]
    %v426 = vld [vmem:[#allocation10 + $0xa8] sm:$0xff]
    %v427 = vld [vmem:[#allocation10 + $0xb0] sm:$0xff]
    %v428 = vld [vmem:[#allocation10 + $0xb8] sm:$0xff]
    %v429 = vld [vmem:[#allocation10 + $0xc0] sm:$0xff]
    %v430 = vld [vmem:[#allocation10 + $0xc8] sm:$0xff]
    %v431 = vld [vmem:[#allocation10 + $0xd0] sm:$0xff]
    %v432 = vld [vmem:[#allocation10 + $0xd8] sm:$0xff]
    %v433 = vld [vmem:[#allocation10 + $0xe0] sm:$0xff]
    %v434 = vld [vmem:[#allocation10 + $0xe8] sm:$0xff]
    %v435 = vld [vmem:[#allocation10 + $0xf0] sm:$0xff]
    %v436 = vld [vmem:[#allocation10 + $0xf8] sm:$0xff]
    %v437 = vld [vmem:[#allocation10 + $0x100] sm:$0xff]
    %v438 = vld [vmem:[#allocation10 + $0x108] sm:$0xff]
    %v439 = vld [vmem:[#allocation10 + $0x110] sm:$0xff]
    %v440 = vld [vmem:[#allocation10 + $0x118] sm:$0xff]
    %v441 = vld [vmem:[#allocation10 + $0x120] sm:$0xff]
    %v442 = vld [vmem:[#allocation10 + $0x128] sm:$0xff]
    %v443 = vld [vmem:[#allocation10 + $0x130] sm:$0xff]
    %v444 = vld [vmem:[#allocation10 + $0x138] sm:$0xff]
    %v445 = vld [vmem:[#allocation10 + $0x140] sm:$0xff]
    %v446 = vld [vmem:[#allocation10 + $0x148] sm:$0xff]
    %v447 = vld [vmem:[#allocation10 + $0x150] sm:$0xff]
    %v448 = vld [vmem:[#allocation10 + $0x158] sm:$0xff]
    %v449 = vld [vmem:[#allocation10 + $0x160] sm:$0xff]
    %v450 = vld [vmem:[#allocation10 + $0x168] sm:$0xff]
    %v451 = vld [vmem:[#allocation10 + $0x170] sm:$0xff]
    %v452 = vld [vmem:[#allocation10 + $0x178] sm:$0xff]
    %v453 = vld [vmem:[#allocation12] sm:$0x1]
    %v455 = vlaneseq
    %v456 = vshrl.u32 %v455, 7
    %v457 = vsub.s32 0, %v456
    %v458 = vrot.slane %v453, %v457
    %v460 = vld [vmem:[#allocation3] sm:$0xff]
    %v461 = vld [vmem:[#allocation2] sm:$0xff]
    %v462 = vld [vmem:[#allocation2 + $0x8] sm:$0xff]
    %v463 = vld [vmem:[#allocation2 + $0x10] sm:$0xff]
    %464 = vmatprep.subr.mxu0 %v406
    %465 = vmatpush1.msra.mxu0 %v405
    %466 = vmatprep.subr.mxu0 %v409
    %467 = vmatpush1.msra.mxu0 %v408
    %468 = vmatprep.subr.mxu0 %v412
    %469 = vmatpush1.msra.mxu0 %v411
    %470 = vmatprep.subr.mxu0 %v415
    %471 = vmatpush1.msra.mxu0 %v414
    %472 = vmatprep.subr.mxu0 %v418
    %473 = vmatpush1.msra.mxu0 %v417
    %474 = vmatprep.subr.mxu0 %v421
    %475 = vmatpush1.msra.mxu0 %v420
    %476 = vmatprep.subr.mxu0 %v424
    %477 = vmatpush1.msra.mxu0 %v423
    %478 = vmatprep.subr.mxu0 %v427
    %479 = vmatpush1.msra.mxu0 %v426
    %480 = vmatprep.subr.mxu0 %v430
    %481 = vmatpush1.msra.mxu0 %v429
    %482 = vmatprep.subr.mxu0 %v433
    %483 = vmatpush1.msra.mxu0 %v432
    %484 = vmatprep.subr.mxu0 %v436
    %485 = vmatpush1.msra.mxu0 %v435
    %486 = vmatprep.subr.mxu0 %v439
    %487 = vmatpush1.msra.mxu0 %v438
    %488 = vmatprep.subr.mxu0 %v442
    %489 = vmatpush1.msra.mxu0 %v441
    %490 = vmatprep.subr.mxu0 %v445
    %491 = vmatpush1.msra.mxu0 %v444
    %492 = vmatprep.subr.mxu0 %v448
    %493 = vmatpush1.msra.mxu0 %v447
    %494 = vmatprep.subr.mxu0 %v451
    %495 = vmatpush1.msra.mxu0 %v450
    %496 = vmatprep.subr.mxu0 0.0
    %497 = vmatpush1.msra.mxu0 0.0
    %498 = vmatprep.subr.mxu0 0.0
    %499 = vmatpush1.msra.mxu0 0.0
    %500 = vmatprep.subr.mxu0 0.0
    %501 = vmatpush1.msra.mxu0 0.0
    %502 = vmatprep.subr.mxu0 0.0
    %503 = vmatpush1.msra.mxu0 0.0
    %504 = vmatprep.subr.mxu0 0.0
    %505 = vmatpush1.msra.mxu0 0.0
    %506 = vmatprep.subr.mxu0 0.0
    %507 = vmatpush1.msra.mxu0 0.0
    %508 = vmatprep.subr.mxu0 0.0
    %509 = vmatpush1.msra.mxu0 0.0
    %510 = vmatprep.subr.mxu0 0.0
    %511 = vmatpush1.msra.mxu0 0.0
    %512 = vmatprep.subr.mxu0 0.0
    %513 = vmatpush1.msra.mxu0 0.0
    %514 = vmatprep.subr.mxu0 0.0
    %515 = vmatpush1.msra.mxu0 0.0
    %516 = vmatprep.subr.mxu0 0.0
    %517 = vmatpush1.msra.mxu0 0.0
    %518 = vmatprep.subr.mxu0 0.0
    %519 = vmatpush1.msra.mxu0 0.0
    %520 = vmatprep.subr.mxu0 0.0
    %521 = vmatpush1.msra.mxu0 0.0
    %522 = vmatprep.subr.mxu0 0.0
    %523 = vmatpush1.msra.mxu0 0.0
    %524 = vmatprep.subr.mxu0 0.0
    %525 = vmatpush1.msra.mxu0 0.0
    %526 = vmatprep.subr.mxu0 0.0
    %527 = vmatpush1.msra.mxu0 0.0
    %528 = vmatprep.mubr.f32.mxu0 0.0
    %529 = vmatmul.mubr.f32.gmra.mrb[0].mxu0 %v460
    %v530 = vpop.f32.mrb[0].mxu0
    %v531 = vadd.f32 0.0, %v530
    %v532 = vpop.f32.mrb[0].mxu0
    %v533 = vadd.f32 0.0, %v532
    %534 = vdwg.mxu0
    %535 = vmatprep.subr.mxu0 0.0
    %536 = vmatpush1.msra.mxu0 %v407
    %537 = vmatprep.subr.mxu0 0.0
    %538 = vmatpush1.msra.mxu0 %v410
    %539 = vmatprep.subr.mxu0 0.0
    %540 = vmatpush1.msra.mxu0 %v413
    %541 = vmatprep.subr.mxu0 0.0
    %542 = vmatpush1.msra.mxu0 %v416
    %543 = vmatprep.subr.mxu0 0.0
    %544 = vmatpush1.msra.mxu0 %v419
    %545 = vmatprep.subr.mxu0 0.0
    %546 = vmatpush1.msra.mxu0 %v422
    %547 = vmatprep.subr.mxu0 0.0
    %548 = vmatpush1.msra.mxu0 %v425
    %549 = vmatprep.subr.mxu0 0.0
    %550 = vmatpush1.msra.mxu0 %v428
    %551 = vmatprep.subr.mxu0 0.0
    %552 = vmatpush1.msra.mxu0 %v431
    %553 = vmatprep.subr.mxu0 0.0
    %554 = vmatpush1.msra.mxu0 %v434
    %555 = vmatprep.subr.mxu0 0.0
    %556 = vmatpush1.msra.mxu0 %v437
    %557 = vmatprep.subr.mxu0 0.0
    %558 = vmatpush1.msra.mxu0 %v440
    %559 = vmatprep.subr.mxu0 0.0
    %560 = vmatpush1.msra.mxu0 %v443
    %561 = vmatprep.subr.mxu0 0.0
    %562 = vmatpush1.msra.mxu0 %v446
    %563 = vmatprep.subr.mxu0 0.0
    %564 = vmatpush1.msra.mxu0 %v449
    %565 = vmatprep.subr.mxu0 0.0
    %566 = vmatpush1.msra.mxu0 %v452
    %567 = vmatprep.subr.mxu0 0.0
    %568 = vmatpush1.msra.mxu0 0.0
    %569 = vmatprep.subr.mxu0 0.0
    %570 = vmatpush1.msra.mxu0 0.0
    %571 = vmatprep.subr.mxu0 0.0
    %572 = vmatpush1.msra.mxu0 0.0
    %573 = vmatprep.subr.mxu0 0.0
    %574 = vmatpush1.msra.mxu0 0.0
    %575 = vmatprep.subr.mxu0 0.0
    %576 = vmatpush1.msra.mxu0 0.0
    %577 = vmatprep.subr.mxu0 0.0
    %578 = vmatpush1.msra.mxu0 0.0
    %579 = vmatprep.subr.mxu0 0.0
    %580 = vmatpush1.msra.mxu0 0.0
    %581 = vmatprep.subr.mxu0 0.0
    %582 = vmatpush1.msra.mxu0 0.0
    %583 = vmatprep.subr.mxu0 0.0
    %584 = vmatpush1.msra.mxu0 0.0
    %585 = vmatprep.subr.mxu0 0.0
    %586 = vmatpush1.msra.mxu0 0.0
    %587 = vmatprep.subr.mxu0 0.0
    %588 = vmatpush1.msra.mxu0 0.0
    %589 = vmatprep.subr.mxu0 0.0
    %590 = vmatpush1.msra.mxu0 0.0
    %591 = vmatprep.subr.mxu0 0.0
    %592 = vmatpush1.msra.mxu0 0.0
    %593 = vmatprep.subr.mxu0 0.0
    %594 = vmatpush1.msra.mxu0 0.0
    %595 = vmatprep.subr.mxu0 0.0
    %596 = vmatpush1.msra.mxu0 0.0
    %597 = vmatprep.subr.mxu0 0.0
    %598 = vmatpush1.msra.mxu0 0.0
    %599 = vmatprep.mubr.f32.mxu0 0.0
    %600 = vmatmul.mubr.f32.gmra.mrb[0].mxu0 %v460
    %v601 = vpop.f32.mrb[0].mxu0
    %v602 = vadd.f32 0.0, %v601
    %v603 = vpop.f32.mrb[0].mxu0
    %604 = vdwg.mxu0
    %v605 = vadd.f32 %v461, %v531
    %v606 = vxor.u32 %v605, 2147483648
    %v607 = vmul.f32 %v606, 1.442695
    %v608 = vpow.pop %v607
    %v609 = vadd.f32 %v608, 1.0
    %v610 = vrcp.pop %v609
    %v611 = vmul.f32 1.0, %v610
    %v612 = vadd.f32 %v462, %v533
    %v613 = vxor.u32 %v612, 2147483648
    %v614 = vmul.f32 %v613, 1.442695
    %v615 = vpow.pop %v614
    %v616 = vadd.f32 %v615, 1.0
    %v617 = vrcp.pop %v616
    %v618 = vmul.f32 1.0, %v617
    %v619 = vadd.f32 %v602, %v458
    %v620 = vmul.f32 %v611, %v619
    %v621 = vadd.f32 %v463, %v620
    %v622 = vtanh.pop %v621
    %v623 = vsub.f32 1.0, %v618
    %v624 = vmul.f32 %v623, %v622
    %v625 = vmul.f32 %v618, %v460
    %v626 = vadd.f32 %v624, %v625
    %627 = vst [vmem:[#allocation3] sm:$0xff] %v626
    %628 = vst [vmem:[#allocation13] sm:$0xff] %v626
    %v629 = vld [vmem:[#allocation3] sm:$0xff]
    %s630 = scalar_lea.vmem [#allocation2], 24
    %v631 = vld [vmem:[%s630] sm:$0xff]
    %v632 = vld [vmem:[%s630 + $0x8] sm:$0xff]
    %v633 = vld [vmem:[%s630 + $0x10] sm:$0xff]
    %634 = vmatprep.subr.mxu0 %v406
    %635 = vmatpush1.msra.mxu0 %v405
    %636 = vmatprep.subr.mxu0 %v409
    %637 = vmatpush1.msra.mxu0 %v408
    %638 = vmatprep.subr.mxu0 %v412
    %639 = vmatpush1.msra.mxu0 %v411
    %640 = vmatprep.subr.mxu0 %v415
    %641 = vmatpush1.msra.mxu0 %v414
    %642 = vmatprep.subr.mxu0 %v418
    %643 = vmatpush1.msra.mxu0 %v417
    %644 = vmatprep.subr.mxu0 %v421
    %645 = vmatpush1.msra.mxu0 %v420
    %646 = vmatprep.subr.mxu0 %v424
    %647 = vmatpush1.msra.mxu0 %v423
    %648 = vmatprep.subr.mxu0 %v427
    %649 = vmatpush1.msra.mxu0 %v426
    %650 = vmatprep.subr.mxu0 %v430
    %651 = vmatpush1.msra.mxu0 %v429
    %652 = vmatprep.subr.mxu0 %v433
    %653 = vmatpush1.msra.mxu0 %v432
    %654 = vmatprep.subr.mxu0 %v436
    %655 = vmatpush1.msra.mxu0 %v435
    %656 = vmatprep.subr.mxu0 %v439
    %657 = vmatpush1.msra.mxu0 %v438
    %658 = vmatprep.subr.mxu0 %v442
    %659 = vmatpush1.msra.mxu0 %v441
    %660 = vmatprep.subr.mxu0 %v445
    %661 = vmatpush1.msra.mxu0 %v444
    %662 = vmatprep.subr.mxu0 %v448
    %663 = vmatpush1.msra.mxu0 %v447
    %664 = vmatprep.subr.mxu0 %v451
    %665 = vmatpush1.msra.mxu0 %v450
    %666 = vmatprep.subr.mxu0 0.0
    %667 = vmatpush1.msra.mxu0 0.0
    %668 = vmatprep.subr.mxu0 0.0
    %669 = vmatpush1.msra.mxu0 0.0
    %670 = vmatprep.subr.mxu0 0.0
    %671 = vmatpush1.msra.mxu0 0.0
    %672 = vmatprep.subr.mxu0 0.0
    %673 = vmatpush1.msra.mxu0 0.0
    %674 = vmatprep.subr.mxu0 0.0
    %675 = vmatpush1.msra.mxu0 0.0
    %676 = vmatprep.subr.mxu0 0.0
    %677 = vmatpush1.msra.mxu0 0.0
    %678 = vmatprep.subr.mxu0 0.0
    %679 = vmatpush1.msra.mxu0 0.0
    %680 = vmatprep.subr.mxu0 0.0
    %681 = vmatpush1.msra.mxu0 0.0
    %682 = vmatprep.subr.mxu0 0.0
    %683 = vmatpush1.msra.mxu0 0.0
    %684 = vmatprep.subr.mxu0 0.0
    %685 = vmatpush1.msra.mxu0 0.0
    %686 = vmatprep.subr.mxu0 0.0
    %687 = vmatpush1.msra.mxu0 0.0
    %688 = vmatprep.subr.mxu0 0.0
    %689 = vmatpush1.msra.mxu0 0.0
    %690 = vmatprep.subr.mxu0 0.0
    %691 = vmatpush1.msra.mxu0 0.0
    %692 = vmatprep.subr.mxu0 0.0
    %693 = vmatpush1.msra.mxu0 0.0
    %694 = vmatprep.subr.mxu0 0.0
    %695 = vmatpush1.msra.mxu0 0.0
    %696 = vmatprep.subr.mxu0 0.0
    %697 = vmatpush1.msra.mxu0 0.0
    %698 = vmatprep.mubr.f32.mxu0 0.0
    %699 = vmatmul.mubr.f32.gmra.mrb[0].mxu0 %v629
    %v700 = vpop.f32.mrb[0].mxu0
    %v701 = vadd.f32 0.0, %v700
    %v702 = vpop.f32.mrb[0].mxu0
    %v703 = vadd.f32 0.0, %v702
    %704 = vdwg.mxu0
    %705 = vmatprep.subr.mxu0 0.0
    %706 = vmatpush1.msra.mxu0 %v407
    %707 = vmatprep.subr.mxu0 0.0
    %708 = vmatpush1.msra.mxu0 %v410
    %709 = vmatprep.subr.mxu0 0.0
    %710 = vmatpush1.msra.mxu0 %v413
    %711 = vmatprep.subr.mxu0 0.0
    %712 = vmatpush1.msra.mxu0 %v416
    %713 = vmatprep.subr.mxu0 0.0
    %714 = vmatpush1.msra.mxu0 %v419
    %715 = vmatprep.subr.mxu0 0.0
    %716 = vmatpush1.msra.mxu0 %v422
    %717 = vmatprep.subr.mxu0 0.0
    %718 = vmatpush1.msra.mxu0 %v425
    %719 = vmatprep.subr.mxu0 0.0
    %720 = vmatpush1.msra.mxu0 %v428
    %721 = vmatprep.subr.mxu0 0.0
    %722 = vmatpush1.msra.mxu0 %v431
    %723 = vmatprep.subr.mxu0 0.0
    %724 = vmatpush1.msra.mxu0 %v434
    %725 = vmatprep.subr.mxu0 0.0
    %726 = vmatpush1.msra.mxu0 %v437
    %727 = vmatprep.subr.mxu0 0.0
    %728 = vmatpush1.msra.mxu0 %v440
    %729 = vmatprep.subr.mxu0 0.0
    %730 = vmatpush1.msra.mxu0 %v443
    %731 = vmatprep.subr.mxu0 0.0
    %732 = vmatpush1.msra.mxu0 %v446
    %733 = vmatprep.subr.mxu0 0.0
    %734 = vmatpush1.msra.mxu0 %v449
    %735 = vmatprep.subr.mxu0 0.0
    %736 = vmatpush1.msra.mxu0 %v452
    %737 = vmatprep.subr.mxu0 0.0
    %738 = vmatpush1.msra.mxu0 0.0
    %739 = vmatprep.subr.mxu0 0.0
    %740 = vmatpush1.msra.mxu0 0.0
    %741 = vmatprep.subr.mxu0 0.0
    %742 = vmatpush1.msra.mxu0 0.0
    %743 = vmatprep.subr.mxu0 0.0
    %744 = vmatpush1.msra.mxu0 0.0
    %745 = vmatprep.subr.mxu0 0.0
    %746 = vmatpush1.msra.mxu0 0.0
    %747 = vmatprep.subr.mxu0 0.0
    %748 = vmatpush1.msra.mxu0 0.0
    %749 = vmatprep.subr.mxu0 0.0
    %750 = vmatpush1.msra.mxu0 0.0
    %751 = vmatprep.subr.mxu0 0.0
    %752 = vmatpush1.msra.mxu0 0.0
    %753 = vmatprep.subr.mxu0 0.0
    %754 = vmatpush1.msra.mxu0 0.0
    %755 = vmatprep.subr.mxu0 0.0
    %756 = vmatpush1.msra.mxu0 0.0
    %757 = vmatprep.subr.mxu0 0.0
    %758 = vmatpush1.msra.mxu0 0.0
    %759 = vmatprep.subr.mxu0 0.0
    %760 = vmatpush1.msra.mxu0 0.0
    %761 = vmatprep.subr.mxu0 0.0
    %762 = vmatpush1.msra.mxu0 0.0
    %763 = vmatprep.subr.mxu0 0.0
    %764 = vmatpush1.msra.mxu0 0.0
    %765 = vmatprep.subr.mxu0 0.0
    %766 = vmatpush1.msra.mxu0 0.0
    %767 = vmatprep.subr.mxu0 0.0
    %768 = vmatpush1.msra.mxu0 0.0
    %769 = vmatprep.mubr.f32.mxu0 0.0
    %770 = vmatmul.mubr.f32.gmra.mrb[0].mxu0 %v629
    %v771 = vpop.f32.mrb[0].mxu0
    %v772 = vadd.f32 0.0, %v771
    %v773 = vpop.f32.mrb[0].mxu0
    %774 = vdwg.mxu0
    %v775 = vadd.f32 %v631, %v701
    %v776 = vxor.u32 %v775, 2147483648
    %v777 = vmul.f32 %v776, 1.442695
    %v778 = vpow.pop %v777
    %v779 = vadd.f32 %v778, 1.0
    %v780 = vrcp.pop %v779
    %v781 = vmul.f32 1.0, %v780
    %v782 = vadd.f32 %v632, %v703
    %v783 = vxor.u32 %v782, 2147483648
    %v784 = vmul.f32 %v783, 1.442695
    %v785 = vpow.pop %v784
    %v786 = vadd.f32 %v785, 1.0
    %v787 = vrcp.pop %v786
    %v788 = vmul.f32 1.0, %v787
    %v789 = vadd.f32 %v772, %v458
    %v790 = vmul.f32 %v781, %v789
    %v791 = vadd.f32 %v633, %v790
    %v792 = vtanh.pop %v791
    %v793 = vsub.f32 1.0, %v788
    %v794 = vmul.f32 %v793, %v792
    %v795 = vmul.f32 %v788, %v629
    %v796 = vadd.f32 %v794, %v795
    %797 = vst [vmem:[#allocation3] sm:$0xff] %v796
    %s798 = scalar_lea.vmem [#allocation13], 8
    %799 = vst [vmem:[%s798] sm:$0xff] %v796
    %v800 = vld [vmem:[#allocation3] sm:$0xff]
    %s801 = scalar_lea.vmem [#allocation2], 48
    %v802 = vld [vmem:[%s801] sm:$0xff]
    %v803 = vld [vmem:[%s801 + $0x8] sm:$0xff]
    %v804 = vld [vmem:[%s801 + $0x10] sm:$0xff]
    %805 = vmatprep.subr.mxu0 %v406
    %806 = vmatpush1.msra.mxu0 %v405
    %807 = vmatprep.subr.mxu0 %v409
    %808 = vmatpush1.msra.mxu0 %v408
    %809 = vmatprep.subr.mxu0 %v412
    %810 = vmatpush1.msra.mxu0 %v411
    %811 = vmatprep.subr.mxu0 %v415
    %812 = vmatpush1.msra.mxu0 %v414
    %813 = vmatprep.subr.mxu0 %v418
    %814 = vmatpush1.msra.mxu0 %v417
    %815 = vmatprep.subr.mxu0 %v421
    %816 = vmatpush1.msra.mxu0 %v420
    %817 = vmatprep.subr.mxu0 %v424
    %818 = vmatpush1.msra.mxu0 %v423
    %819 = vmatprep.subr.mxu0 %v427
    %820 = vmatpush1.msra.mxu0 %v426
    %821 = vmatprep.subr.mxu0 %v430
    %822 = vmatpush1.msra.mxu0 %v429
    %823 = vmatprep.subr.mxu0 %v433
    %824 = vmatpush1.msra.mxu0 %v432
    %825 = vmatprep.subr.mxu0 %v436
    %826 = vmatpush1.msra.mxu0 %v435
    %827 = vmatprep.subr.mxu0 %v439
    %828 = vmatpush1.msra.mxu0 %v438
    %829 = vmatprep.subr.mxu0 %v442
    %830 = vmatpush1.msra.mxu0 %v441
    %831 = vmatprep.subr.mxu0 %v445
    %832 = vmatpush1.msra.mxu0 %v444
    %833 = vmatprep.subr.mxu0 %v448
    %834 = vmatpush1.msra.mxu0 %v447
    %835 = vmatprep.subr.mxu0 %v451
    %836 = vmatpush1.msra.mxu0 %v450
    %837 = vmatprep.subr.mxu0 0.0
    %838 = vmatpush1.msra.mxu0 0.0
    %839 = vmatprep.subr.mxu0 0.0
    %840 = vmatpush1.msra.mxu0 0.0
    %841 = vmatprep.subr.mxu0 0.0
    %842 = vmatpush1.msra.mxu0 0.0
    %843 = vmatprep.subr.mxu0 0.0
    %844 = vmatpush1.msra.mxu0 0.0
    %845 = vmatprep.subr.mxu0 0.0
    %846 = vmatpush1.msra.mxu0 0.0
    %847 = vmatprep.subr.mxu0 0.0
    %848 = vmatpush1.msra.mxu0 0.0
    %849 = vmatprep.subr.mxu0 0.0
    %850 = vmatpush1.msra.mxu0 0.0
    %851 = vmatprep.subr.mxu0 0.0
    %852 = vmatpush1.msra.mxu0 0.0
    %853 = vmatprep.subr.mxu0 0.0
    %854 = vmatpush1.msra.mxu0 0.0
    %855 = vmatprep.subr.mxu0 0.0
    %856 = vmatpush1.msra.mxu0 0.0
    %857 = vmatprep.subr.mxu0 0.0
    %858 = vmatpush1.msra.mxu0 0.0
    %859 = vmatprep.subr.mxu0 0.0
    %860 = vmatpush1.msra.mxu0 0.0
    %861 = vmatprep.subr.mxu0 0.0
    %862 = vmatpush1.msra.mxu0 0.0
    %863 = vmatprep.subr.mxu0 0.0
    %864 = vmatpush1.msra.mxu0 0.0
    %865 = vmatprep.subr.mxu0 0.0
    %866 = vmatpush1.msra.mxu0 0.0
    %867 = vmatprep.subr.mxu0 0.0
    %868 = vmatpush1.msra.mxu0 0.0
    %869 = vmatprep.mubr.f32.mxu0 0.0
    %870 = vmatmul.mubr.f32.gmra.mrb[0].mxu0 %v800
    %v871 = vpop.f32.mrb[0].mxu0
    %v872 = vadd.f32 0.0, %v871
    %v873 = vpop.f32.mrb[0].mxu0
    %v874 = vadd.f32 0.0, %v873
    %875 = vdwg.mxu0
    %876 = vmatprep.subr.mxu0 0.0
    %877 = vmatpush1.msra.mxu0 %v407
    %878 = vmatprep.subr.mxu0 0.0
    %879 = vmatpush1.msra.mxu0 %v410
    %880 = vmatprep.subr.mxu0 0.0
    %881 = vmatpush1.msra.mxu0 %v413
    %882 = vmatprep.subr.mxu0 0.0
    %883 = vmatpush1.msra.mxu0 %v416
    %884 = vmatprep.subr.mxu0 0.0
    %885 = vmatpush1.msra.mxu0 %v419
    %886 = vmatprep.subr.mxu0 0.0
    %887 = vmatpush1.msra.mxu0 %v422
    %888 = vmatprep.subr.mxu0 0.0
    %889 = vmatpush1.msra.mxu0 %v425
    %890 = vmatprep.subr.mxu0 0.0
    %891 = vmatpush1.msra.mxu0 %v428
    %892 = vmatprep.subr.mxu0 0.0
    %893 = vmatpush1.msra.mxu0 %v431
    %894 = vmatprep.subr.mxu0 0.0
    %895 = vmatpush1.msra.mxu0 %v434
    %896 = vmatprep.subr.mxu0 0.0
    %897 = vmatpush1.msra.mxu0 %v437
    %898 = vmatprep.subr.mxu0 0.0
    %899 = vmatpush1.msra.mxu0 %v440
    %900 = vmatprep.subr.mxu0 0.0
    %901 = vmatpush1.msra.mxu0 %v443
    %902 = vmatprep.subr.mxu0 0.0
    %903 = vmatpush1.msra.mxu0 %v446
    %904 = vmatprep.subr.mxu0 0.0
    %905 = vmatpush1.msra.mxu0 %v449
    %906 = vmatprep.subr.mxu0 0.0
    %907 = vmatpush1.msra.mxu0 %v452
    %908 = vmatprep.subr.mxu0 0.0
    %909 = vmatpush1.msra.mxu0 0.0
    %910 = vmatprep.subr.mxu0 0.0
    %911 = vmatpush1.msra.mxu0 0.0
    %912 = vmatprep.subr.mxu0 0.0
    %913 = vmatpush1.msra.mxu0 0.0
    %914 = vmatprep.subr.mxu0 0.0
    %915 = vmatpush1.msra.mxu0 0.0
    %916 = vmatprep.subr.mxu0 0.0
    %917 = vmatpush1.msra.mxu0 0.0
    %918 = vmatprep.subr.mxu0 0.0
    %919 = vmatpush1.msra.mxu0 0.0
    %920 = vmatprep.subr.mxu0 0.0
    %921 = vmatpush1.msra.mxu0 0.0
    %922 = vmatprep.subr.mxu0 0.0
    %923 = vmatpush1.msra.mxu0 0.0
    %924 = vmatprep.subr.mxu0 0.0
    %925 = vmatpush1.msra.mxu0 0.0
    %926 = vmatprep.subr.mxu0 0.0
    %927 = vmatpush1.msra.mxu0 0.0
    %928 = vmatprep.subr.mxu0 0.0
    %929 = vmatpush1.msra.mxu0 0.0
    %930 = vmatprep.subr.mxu0 0.0
    %931 = vmatpush1.msra.mxu0 0.0
    %932 = vmatprep.subr.mxu0 0.0
    %933 = vmatpush1.msra.mxu0 0.0
    %934 = vmatprep.subr.mxu0 0.0
    %935 = vmatpush1.msra.mxu0 0.0
    %936 = vmatprep.subr.mxu0 0.0
    %937 = vmatpush1.msra.mxu0 0.0
    %938 = vmatprep.subr.mxu0 0.0
    %939 = vmatpush1.msra.mxu0 0.0
    %940 = vmatprep.mubr.f32.mxu0 0.0
    %941 = vmatmul.mubr.f32.gmra.mrb[0].mxu0 %v800
    %v942 = vpop.f32.mrb[0].mxu0
    %v943 = vadd.f32 0.0, %v942
    %v944 = vpop.f32.mrb[0].mxu0
    %945 = vdwg.mxu0
    %v946 = vadd.f32 %v802, %v872
    %v947 = vxor.u32 %v946, 2147483648
    %v948 = vmul.f32 %v947, 1.442695
    %v949 = vpow.pop %v948
    %v950 = vadd.f32 %v949, 1.0
    %v951 = vrcp.pop %v950
    %v952 = vmul.f32 1.0, %v951
    %v953 = vadd.f32 %v803, %v874
    %v954 = vxor.u32 %v953, 2147483648
    %v955 = vmul.f32 %v954, 1.442695
    %v956 = vpow.pop %v955
    %v957 = vadd.f32 %v956, 1.0
    %v958 = vrcp.pop %v957
    %v959 = vmul.f32 1.0, %v958
    %v960 = vadd.f32 %v943, %v458
    %v961 = vmul.f32 %v952, %v960
    %v962 = vadd.f32 %v804, %v961
    %v963 = vtanh.pop %v962
    %v964 = vsub.f32 1.0, %v959
    %v965 = vmul.f32 %v964, %v963
    %v966 = vmul.f32 %v959, %v800
    %v967 = vadd.f32 %v965, %v966
    %968 = vst [vmem:[#allocation3] sm:$0xff] %v967
    %s969 = scalar_lea.vmem [#allocation13], 16
    %970 = vst [vmem:[%s969] sm:$0xff] %v967
    %v971 = vld [vmem:[#allocation3] sm:$0xff]
    %s972 = scalar_lea.vmem [#allocation2], 72
    %v973 = vld [vmem:[%s972] sm:$0xff]
    %v974 = vld [vmem:[%s972 + $0x8] sm:$0xff]
    %v975 = vld [vmem:[%s972 + $0x10] sm:$0xff]
    %976 = vmatprep.subr.mxu0 %v406
    %977 = vmatpush1.msra.mxu0 %v405
    %978 = vmatprep.subr.mxu0 %v409
    %979 = vmatpush1.msra.mxu0 %v408
    %980 = vmatprep.subr.mxu0 %v412
    %981 = vmatpush1.msra.mxu0 %v411
    %982 = vmatprep.subr.mxu0 %v415
    %983 = vmatpush1.msra.mxu0 %v414
    %984 = vmatprep.subr.mxu0 %v418
    %985 = vmatpush1.msra.mxu0 %v417
    %986 = vmatprep.subr.mxu0 %v421
    %987 = vmatpush1.msra.mxu0 %v420
    %988 = vmatprep.subr.mxu0 %v424
    %989 = vmatpush1.msra.mxu0 %v423
    %990 = vmatprep.subr.mxu0 %v427
    %991 = vmatpush1.msra.mxu0 %v426
    %992 = vmatprep.subr.mxu0 %v430
    %993 = vmatpush1.msra.mxu0 %v429
    %994 = vmatprep.subr.mxu0 %v433
    %995 = vmatpush1.msra.mxu0 %v432
    %996 = vmatprep.subr.mxu0 %v436
    %997 = vmatpush1.msra.mxu0 %v435
    %998 = vmatprep.subr.mxu0 %v439
    %999 = vmatpush1.msra.mxu0 %v438
    %1000 = vmatprep.subr.mxu0 %v442
    %1001 = vmatpush1.msra.mxu0 %v441
    %1002 = vmatprep.subr.mxu0 %v445
    %1003 = vmatpush1.msra.mxu0 %v444
    %1004 = vmatprep.subr.mxu0 %v448
    %1005 = vmatpush1.msra.mxu0 %v447
    %1006 = vmatprep.subr.mxu0 %v451
    %1007 = vmatpush1.msra.mxu0 %v450
    %1008 = vmatprep.subr.mxu0 0.0
    %1009 = vmatpush1.msra.mxu0 0.0
    %1010 = vmatprep.subr.mxu0 0.0
    %1011 = vmatpush1.msra.mxu0 0.0
    %1012 = vmatprep.subr.mxu0 0.0
    %1013 = vmatpush1.msra.mxu0 0.0
    %1014 = vmatprep.subr.mxu0 0.0
    %1015 = vmatpush1.msra.mxu0 0.0
    %1016 = vmatprep.subr.mxu0 0.0
    %1017 = vmatpush1.msra.mxu0 0.0
    %1018 = vmatprep.subr.mxu0 0.0
    %1019 = vmatpush1.msra.mxu0 0.0
    %1020 = vmatprep.subr.mxu0 0.0
    %1021 = vmatpush1.msra.mxu0 0.0
    %1022 = vmatprep.subr.mxu0 0.0
    %1023 = vmatpush1.msra.mxu0 0.0
    %1024 = vmatprep.subr.mxu0 0.0
    %1025 = vmatpush1.msra.mxu0 0.0
    %1026 = vmatprep.subr.mxu0 0.0
    %1027 = vmatpush1.msra.mxu0 0.0
    %1028 = vmatprep.subr.mxu0 0.0
    %1029 = vmatpush1.msra.mxu0 0.0
    %1030 = vmatprep.subr.mxu0 0.0
    %1031 = vmatpush1.msra.mxu0 0.0
    %1032 = vmatprep.subr.mxu0 0.0
    %1033 = vmatpush1.msra.mxu0 0.0
    %1034 = vmatprep.subr.mxu0 0.0
    %1035 = vmatpush1.msra.mxu0 0.0
    %1036 = vmatprep.subr.mxu0 0.0
    %1037 = vmatpush1.msra.mxu0 0.0
    %1038 = vmatprep.subr.mxu0 0.0
    %1039 = vmatpush1.msra.mxu0 0.0
    %1040 = vmatprep.mubr.f32.mxu0 0.0
    %1041 = vmatmul.mubr.f32.gmra.mrb[0].mxu0 %v971
    %v1042 = vpop.f32.mrb[0].mxu0
    %v1043 = vadd.f32 0.0, %v1042
    %v1044 = vpop.f32.mrb[0].mxu0
    %v1045 = vadd.f32 0.0, %v1044
    %1046 = vdwg.mxu0
    %1047 = vmatprep.subr.mxu0 0.0
    %1048 = vmatpush1.msra.mxu0 %v407
    %1049 = vmatprep.subr.mxu0 0.0
    %1050 = vmatpush1.msra.mxu0 %v410
    %1051 = vmatprep.subr.mxu0 0.0
    %1052 = vmatpush1.msra.mxu0 %v413
    %1053 = vmatprep.subr.mxu0 0.0
    %1054 = vmatpush1.msra.mxu0 %v416
    %1055 = vmatprep.subr.mxu0 0.0
    %1056 = vmatpush1.msra.mxu0 %v419
    %1057 = vmatprep.subr.mxu0 0.0
    %1058 = vmatpush1.msra.mxu0 %v422
    %1059 = vmatprep.subr.mxu0 0.0
    %1060 = vmatpush1.msra.mxu0 %v425
    %1061 = vmatprep.subr.mxu0 0.0
    %1062 = vmatpush1.msra.mxu0 %v428
    %1063 = vmatprep.subr.mxu0 0.0
    %1064 = vmatpush1.msra.mxu0 %v431
    %1065 = vmatprep.subr.mxu0 0.0
    %1066 = vmatpush1.msra.mxu0 %v434
    %1067 = vmatprep.subr.mxu0 0.0
    %1068 = vmatpush1.msra.mxu0 %v437
    %1069 = vmatprep.subr.mxu0 0.0
    %1070 = vmatpush1.msra.mxu0 %v440
    %1071 = vmatprep.subr.mxu0 0.0
    %1072 = vmatpush1.msra.mxu0 %v443
    %1073 = vmatprep.subr.mxu0 0.0
    %1074 = vmatpush1.msra.mxu0 %v446
    %1075 = vmatprep.subr.mxu0 0.0
    %1076 = vmatpush1.msra.mxu0 %v449
    %1077 = vmatprep.subr.mxu0 0.0
    %1078 = vmatpush1.msra.mxu0 %v452
    %1079 = vmatprep.subr.mxu0 0.0
    %1080 = vmatpush1.msra.mxu0 0.0
    %1081 = vmatprep.subr.mxu0 0.0
    %1082 = vmatpush1.msra.mxu0 0.0
    %1083 = vmatprep.subr.mxu0 0.0
    %1084 = vmatpush1.msra.mxu0 0.0
    %1085 = vmatprep.subr.mxu0 0.0
    %1086 = vmatpush1.msra.mxu0 0.0
    %1087 = vmatprep.subr.mxu0 0.0
    %1088 = vmatpush1.msra.mxu0 0.0
    %1089 = vmatprep.subr.mxu0 0.0
    %1090 = vmatpush1.msra.mxu0 0.0
    %1091 = vmatprep.subr.mxu0 0.0
    %1092 = vmatpush1.msra.mxu0 0.0
    %1093 = vmatprep.subr.mxu0 0.0
    %1094 = vmatpush1.msra.mxu0 0.0
    %1095 = vmatprep.subr.mxu0 0.0
    %1096 = vmatpush1.msra.mxu0 0.0
    %1097 = vmatprep.subr.mxu0 0.0
    %1098 = vmatpush1.msra.mxu0 0.0
    %1099 = vmatprep.subr.mxu0 0.0
    %1100 = vmatpush1.msra.mxu0 0.0
    %1101 = vmatprep.subr.mxu0 0.0
    %1102 = vmatpush1.msra.mxu0 0.0
    %1103 = vmatprep.subr.mxu0 0.0
    %1104 = vmatpush1.msra.mxu0 0.0
    %1105 = vmatprep.subr.mxu0 0.0
    %1106 = vmatpush1.msra.mxu0 0.0
    %1107 = vmatprep.subr.mxu0 0.0
    %1108 = vmatpush1.msra.mxu0 0.0
    %1109 = vmatprep.subr.mxu0 0.0
    %1110 = vmatpush1.msra.mxu0 0.0
    %1111 = vmatprep.mubr.f32.mxu0 0.0
    %1112 = vmatmul.mubr.f32.gmra.mrb[0].mxu0 %v971
    %v1113 = vpop.f32.mrb[0].mxu0
    %v1114 = vadd.f32 0.0, %v1113
    %v1115 = vpop.f32.mrb[0].mxu0
    %1116 = vdwg.mxu0
    %v1117 = vadd.f32 %v973, %v1043
    %v1118 = vxor.u32 %v1117, 2147483648
    %v1119 = vmul.f32 %v1118, 1.442695
    %v1120 = vpow.pop %v1119
    %v1121 = vadd.f32 %v1120, 1.0
    %v1122 = vrcp.pop %v1121
    %v1123 = vmul.f32 1.0, %v1122
    %v1124 = vadd.f32 %v974, %v1045
    %v1125 = vxor.u32 %v1124, 2147483648
    %v1126 = vmul.f32 %v1125, 1.442695
    %v1127 = vpow.pop %v1126
    %v1128 = vadd.f32 %v1127, 1.0
    %v1129 = vrcp.pop %v1128
    %v1130 = vmul.f32 1.0, %v1129
    %v1131 = vadd.f32 %v1114, %v458
    %v1132 = vmul.f32 %v1123, %v1131
    %v1133 = vadd.f32 %v975, %v1132
    %v1134 = vtanh.pop %v1133
    %v1135 = vsub.f32 1.0, %v1130
    %v1136 = vmul.f32 %v1135, %v1134
    %v1137 = vmul.f32 %v1130, %v971
    %v1138 = vadd.f32 %v1136, %v1137
    %1139 = vst [vmem:[#allocation3] sm:$0xff] %v1138
    %s1140 = scalar_lea.vmem [#allocation13], 24
    %1141 = vst [vmem:[%s1140] sm:$0xff] %v1138
    %v1142 = vld [vmem:[#allocation3] sm:$0xff]
    %s1143 = scalar_lea.vmem [#allocation2], 96
    %v1144 = vld [vmem:[%s1143] sm:$0xff]
    %v1145 = vld [vmem:[%s1143 + $0x8] sm:$0xff]
    %v1146 = vld [vmem:[%s1143 + $0x10] sm:$0xff]
    %1147 = vmatprep.subr.mxu0 %v406
    %1148 = vmatpush1.msra.mxu0 %v405
    %1149 = vmatprep.subr.mxu0 %v409
    %1150 = vmatpush1.msra.mxu0 %v408
    %1151 = vmatprep.subr.mxu0 %v412
    %1152 = vmatpush1.msra.mxu0 %v411
    %1153 = vmatprep.subr.mxu0 %v415
    %1154 = vmatpush1.msra.mxu0 %v414
    %1155 = vmatprep.subr.mxu0 %v418
    %1156 = vmatpush1.msra.mxu0 %v417
    %1157 = vmatprep.subr.mxu0 %v421
    %1158 = vmatpush1.msra.mxu0 %v420
    %1159 = vmatprep.subr.mxu0 %v424
    %1160 = vmatpush1.msra.mxu0 %v423
    %1161 = vmatprep.subr.mxu0 %v427
    %1162 = vmatpush1.msra.mxu0 %v426
    %1163 = vmatprep.subr.mxu0 %v430
    %1164 = vmatpush1.msra.mxu0 %v429
    %1165 = vmatprep.subr.mxu0 %v433
    %1166 = vmatpush1.msra.mxu0 %v432
    %1167 = vmatprep.subr.mxu0 %v436
    %1168 = vmatpush1.msra.mxu0 %v435
    %1169 = vmatprep.subr.mxu0 %v439
    %1170 = vmatpush1.msra.mxu0 %v438
    %1171 = vmatprep.subr.mxu0 %v442
    %1172 = vmatpush1.msra.mxu0 %v441
    %1173 = vmatprep.subr.mxu0 %v445
    %1174 = vmatpush1.msra.mxu0 %v444
    %1175 = vmatprep.subr.mxu0 %v448
    %1176 = vmatpush1.msra.mxu0 %v447
    %1177 = vmatprep.subr.mxu0 %v451
    %1178 = vmatpush1.msra.mxu0 %v450
    %1179 = vmatprep.subr.mxu0 0.0
    %1180 = vmatpush1.msra.mxu0 0.0
    %1181 = vmatprep.subr.mxu0 0.0
    %1182 = vmatpush1.msra.mxu0 0.0
    %1183 = vmatprep.subr.mxu0 0.0
    %1184 = vmatpush1.msra.mxu0 0.0
    %1185 = vmatprep.subr.mxu0 0.0
    %1186 = vmatpush1.msra.mxu0 0.0
    %1187 = vmatprep.subr.mxu0 0.0
    %1188 = vmatpush1.msra.mxu0 0.0
    %1189 = vmatprep.subr.mxu0 0.0
    %1190 = vmatpush1.msra.mxu0 0.0
    %1191 = vmatprep.subr.mxu0 0.0
    %1192 = vmatpush1.msra.mxu0 0.0
    %1193 = vmatprep.subr.mxu0 0.0
    %1194 = vmatpush1.msra.mxu0 0.0
    %1195 = vmatprep.subr.mxu0 0.0
    %1196 = vmatpush1.msra.mxu0 0.0
    %1197 = vmatprep.subr.mxu0 0.0
    %1198 = vmatpush1.msra.mxu0 0.0
    %1199 = vmatprep.subr.mxu0 0.0
    %1200 = vmatpush1.msra.mxu0 0.0
    %1201 = vmatprep.subr.mxu0 0.0
    %1202 = vmatpush1.msra.mxu0 0.0
    %1203 = vmatprep.subr.mxu0 0.0
    %1204 = vmatpush1.msra.mxu0 0.0
    %1205 = vmatprep.subr.mxu0 0.0
    %1206 = vmatpush1.msra.mxu0 0.0
    %1207 = vmatprep.subr.mxu0 0.0
    %1208 = vmatpush1.msra.mxu0 0.0
    %1209 = vmatprep.subr.mxu0 0.0
    %1210 = vmatpush1.msra.mxu0 0.0
    %1211 = vmatprep.mubr.f32.mxu0 0.0
    %1212 = vmatmul.mubr.f32.gmra.mrb[0].mxu0 %v1142
    %v1213 = vpop.f32.mrb[0].mxu0
    %v1214 = vadd.f32 0.0, %v1213
    %v1215 = vpop.f32.mrb[0].mxu0
    %v1216 = vadd.f32 0.0, %v1215
    %1217 = vdwg.mxu0
    %1218 = vmatprep.subr.mxu0 0.0
    %1219 = vmatpush1.msra.mxu0 %v407
    %1220 = vmatprep.subr.mxu0 0.0
    %1221 = vmatpush1.msra.mxu0 %v410
    %1222 = vmatprep.subr.mxu0 0.0
    %1223 = vmatpush1.msra.mxu0 %v413
    %1224 = vmatprep.subr.mxu0 0.0
    %1225 = vmatpush1.msra.mxu0 %v416
    %1226 = vmatprep.subr.mxu0 0.0
    %1227 = vmatpush1.msra.mxu0 %v419
    %1228 = vmatprep.subr.mxu0 0.0
    %1229 = vmatpush1.msra.mxu0 %v422
    %1230 = vmatprep.subr.mxu0 0.0
    %1231 = vmatpush1.msra.mxu0 %v425
    %1232 = vmatprep.subr.mxu0 0.0
    %1233 = vmatpush1.msra.mxu0 %v428
    %1234 = vmatprep.subr.mxu0 0.0
    %1235 = vmatpush1.msra.mxu0 %v431
    %1236 = vmatprep.subr.mxu0 0.0
    %1237 = vmatpush1.msra.mxu0 %v434
    %1238 = vmatprep.subr.mxu0 0.0
    %1239 = vmatpush1.msra.mxu0 %v437
    %1240 = vmatprep.subr.mxu0 0.0
    %1241 = vmatpush1.msra.mxu0 %v440
    %1242 = vmatprep.subr.mxu0 0.0
    %1243 = vmatpush1.msra.mxu0 %v443
    %1244 = vmatprep.subr.mxu0 0.0
    %1245 = vmatpush1.msra.mxu0 %v446
    %1246 = vmatprep.subr.mxu0 0.0
    %1247 = vmatpush1.msra.mxu0 %v449
    %1248 = vmatprep.subr.mxu0 0.0
    %1249 = vmatpush1.msra.mxu0 %v452
    %1250 = vmatprep.subr.mxu0 0.0
    %1251 = vmatpush1.msra.mxu0 0.0
    %1252 = vmatprep.subr.mxu0 0.0
    %1253 = vmatpush1.msra.mxu0 0.0
    %1254 = vmatprep.subr.mxu0 0.0
    %1255 = vmatpush1.msra.mxu0 0.0
    %1256 = vmatprep.subr.mxu0 0.0
    %1257 = vmatpush1.msra.mxu0 0.0
    %1258 = vmatprep.subr.mxu0 0.0
    %1259 = vmatpush1.msra.mxu0 0.0
    %1260 = vmatprep.subr.mxu0 0.0
    %1261 = vmatpush1.msra.mxu0 0.0
    %1262 = vmatprep.subr.mxu0 0.0
    %1263 = vmatpush1.msra.mxu0 0.0
    %1264 = vmatprep.subr.mxu0 0.0
    %1265 = vmatpush1.msra.mxu0 0.0
    %1266 = vmatprep.subr.mxu0 0.0
    %1267 = vmatpush1.msra.mxu0 0.0
    %1268 = vmatprep.subr.mxu0 0.0
    %1269 = vmatpush1.msra.mxu0 0.0
    %1270 = vmatprep.subr.mxu0 0.0
    %1271 = vmatpush1.msra.mxu0 0.0
    %1272 = vmatprep.subr.mxu0 0.0
    %1273 = vmatpush1.msra.mxu0 0.0
    %1274 = vmatprep.subr.mxu0 0.0
    %1275 = vmatpush1.msra.mxu0 0.0
    %1276 = vmatprep.subr.mxu0 0.0
    %1277 = vmatpush1.msra.mxu0 0.0
    %1278 = vmatprep.subr.mxu0 0.0
    %1279 = vmatpush1.msra.mxu0 0.0
    %1280 = vmatprep.subr.mxu0 0.0
    %1281 = vmatpush1.msra.mxu0 0.0
    %1282 = vmatprep.mubr.f32.mxu0 0.0
    %1283 = vmatmul.mubr.f32.gmra.mrb[0].mxu0 %v1142
    %v1284 = vpop.f32.mrb[0].mxu0
    %v1285 = vadd.f32 0.0, %v1284
    %v1286 = vpop.f32.mrb[0].mxu0
    %1287 = vdwg.mxu0
    %v1288 = vadd.f32 %v1144, %v1214
    %v1289 = vxor.u32 %v1288, 2147483648
    %v1290 = vmul.f32 %v1289, 1.442695
    %v1291 = vpow.pop %v1290
    %v1292 = vadd.f32 %v1291, 1.0
    %v1293 = vrcp.pop %v1292
    %v1294 = vmul.f32 1.0, %v1293
    %v1295 = vadd.f32 %v1145, %v1216
    %v1296 = vxor.u32 %v1295, 2147483648
    %v1297 = vmul.f32 %v1296, 1.442695
    %v1298 = vpow.pop %v1297
    %v1299 = vadd.f32 %v1298, 1.0
    %v1300 = vrcp.pop %v1299
    %v1301 = vmul.f32 1.0, %v1300
    %v1302 = vadd.f32 %v1285, %v458
    %v1303 = vmul.f32 %v1294, %v1302
    %v1304 = vadd.f32 %v1146, %v1303
    %v1305 = vtanh.pop %v1304
    %v1306 = vsub.f32 1.0, %v1301
    %v1307 = vmul.f32 %v1306, %v1305
    %v1308 = vmul.f32 %v1301, %v1142
    %v1309 = vadd.f32 %v1307, %v1308
    %1310 = vst [vmem:[#allocation3] sm:$0xff] %v1309
    %s1311 = scalar_lea.vmem [#allocation13], 32
    %1312 = vst [vmem:[%s1311] sm:$0xff] %v1309
    %v1313 = vld [vmem:[#allocation3] sm:$0xff]
    %s1314 = scalar_lea.vmem [#allocation2], 120
    %v1315 = vld [vmem:[%s1314] sm:$0xff]
    %v1316 = vld [vmem:[%s1314 + $0x8] sm:$0xff]
    %v1317 = vld [vmem:[%s1314 + $0x10] sm:$0xff]
    %1318 = vmatprep.subr.mxu0 %v406
    %1319 = vmatpush1.msra.mxu0 %v405
    %1320 = vmatprep.subr.mxu0 %v409
    %1321 = vmatpush1.msra.mxu0 %v408
    %1322 = vmatprep.subr.mxu0 %v412
    %1323 = vmatpush1.msra.mxu0 %v411
    %1324 = vmatprep.subr.mxu0 %v415
    %1325 = vmatpush1.msra.mxu0 %v414
    %1326 = vmatprep.subr.mxu0 %v418
    %1327 = vmatpush1.msra.mxu0 %v417
    %1328 = vmatprep.subr.mxu0 %v421
    %1329 = vmatpush1.msra.mxu0 %v420
    %1330 = vmatprep.subr.mxu0 %v424
    %1331 = vmatpush1.msra.mxu0 %v423
    %1332 = vmatprep.subr.mxu0 %v427
    %1333 = vmatpush1.msra.mxu0 %v426
    %1334 = vmatprep.subr.mxu0 %v430
    %1335 = vmatpush1.msra.mxu0 %v429
    %1336 = vmatprep.subr.mxu0 %v433
    %1337 = vmatpush1.msra.mxu0 %v432
    %1338 = vmatprep.subr.mxu0 %v436
    %1339 = vmatpush1.msra.mxu0 %v435
    %1340 = vmatprep.subr.mxu0 %v439
    %1341 = vmatpush1.msra.mxu0 %v438
    %1342 = vmatprep.subr.mxu0 %v442
    %1343 = vmatpush1.msra.mxu0 %v441
    %1344 = vmatprep.subr.mxu0 %v445
    %1345 = vmatpush1.msra.mxu0 %v444
    %1346 = vmatprep.subr.mxu0 %v448
    %1347 = vmatpush1.msra.mxu0 %v447
    %1348 = vmatprep.subr.mxu0 %v451
    %1349 = vmatpush1.msra.mxu0 %v450
    %1350 = vmatprep.subr.mxu0 0.0
    %1351 = vmatpush1.msra.mxu0 0.0
    %1352 = vmatprep.subr.mxu0 0.0
    %1353 = vmatpush1.msra.mxu0 0.0
    %1354 = vmatprep.subr.mxu0 0.0
    %1355 = vmatpush1.msra.mxu0 0.0
    %1356 = vmatprep.subr.mxu0 0.0
    %1357 = vmatpush1.msra.mxu0 0.0
    %1358 = vmatprep.subr.mxu0 0.0
    %1359 = vmatpush1.msra.mxu0 0.0
    %1360 = vmatprep.subr.mxu0 0.0
    %1361 = vmatpush1.msra.mxu0 0.0
    %1362 = vmatprep.subr.mxu0 0.0
    %1363 = vmatpush1.msra.mxu0 0.0
    %1364 = vmatprep.subr.mxu0 0.0
    %1365 = vmatpush1.msra.mxu0 0.0
    %1366 = vmatprep.subr.mxu0 0.0
    %1367 = vmatpush1.msra.mxu0 0.0
    %1368 = vmatprep.subr.mxu0 0.0
    %1369 = vmatpush1.msra.mxu0 0.0
    %1370 = vmatprep.subr.mxu0 0.0
    %1371 = vmatpush1.msra.mxu0 0.0
    %1372 = vmatprep.subr.mxu0 0.0
    %1373 = vmatpush1.msra.mxu0 0.0
    %1374 = vmatprep.subr.mxu0 0.0
    %1375 = vmatpush1.msra.mxu0 0.0
    %1376 = vmatprep.subr.mxu0 0.0
    %1377 = vmatpush1.msra.mxu0 0.0
    %1378 = vmatprep.subr.mxu0 0.0
    %1379 = vmatpush1.msra.mxu0 0.0
    %1380 = vmatprep.subr.mxu0 0.0
    %1381 = vmatpush1.msra.mxu0 0.0
    %1382 = vmatprep.mubr.f32.mxu0 0.0
    %1383 = vmatmul.mubr.f32.gmra.mrb[0].mxu0 %v1313
    %v1384 = vpop.f32.mrb[0].mxu0
    %v1385 = vadd.f32 0.0, %v1384
    %v1386 = vpop.f32.mrb[0].mxu0
    %v1387 = vadd.f32 0.0, %v1386
    %1388 = vdwg.mxu0
    %1389 = vmatprep.subr.mxu0 0.0
    %1390 = vmatpush1.msra.mxu0 %v407
    %1391 = vmatprep.subr.mxu0 0.0
    %1392 = vmatpush1.msra.mxu0 %v410
    %1393 = vmatprep.subr.mxu0 0.0
    %1394 = vmatpush1.msra.mxu0 %v413
    %1395 = vmatprep.subr.mxu0 0.0
    %1396 = vmatpush1.msra.mxu0 %v416
    %1397 = vmatprep.subr.mxu0 0.0
    %1398 = vmatpush1.msra.mxu0 %v419
    %1399 = vmatprep.subr.mxu0 0.0
    %1400 = vmatpush1.msra.mxu0 %v422
    %1401 = vmatprep.subr.mxu0 0.0
    %1402 = vmatpush1.msra.mxu0 %v425
    %1403 = vmatprep.subr.mxu0 0.0
    %1404 = vmatpush1.msra.mxu0 %v428
    %1405 = vmatprep.subr.mxu0 0.0
    %1406 = vmatpush1.msra.mxu0 %v431
    %1407 = vmatprep.subr.mxu0 0.0
    %1408 = vmatpush1.msra.mxu0 %v434
    %1409 = vmatprep.subr.mxu0 0.0
    %1410 = vmatpush1.msra.mxu0 %v437
    %1411 = vmatprep.subr.mxu0 0.0
    %1412 = vmatpush1.msra.mxu0 %v440
    %1413 = vmatprep.subr.mxu0 0.0
    %1414 = vmatpush1.msra.mxu0 %v443
    %1415 = vmatprep.subr.mxu0 0.0
    %1416 = vmatpush1.msra.mxu0 %v446
    %1417 = vmatprep.subr.mxu0 0.0
    %1418 = vmatpush1.msra.mxu0 %v449
    %1419 = vmatprep.subr.mxu0 0.0
    %1420 = vmatpush1.msra.mxu0 %v452
    %1421 = vmatprep.subr.mxu0 0.0
    %1422 = vmatpush1.msra.mxu0 0.0
    %1423 = vmatprep.subr.mxu0 0.0
    %1424 = vmatpush1.msra.mxu0 0.0
    %1425 = vmatprep.subr.mxu0 0.0
    %1426 = vmatpush1.msra.mxu0 0.0
    %1427 = vmatprep.subr.mxu0 0.0
    %1428 = vmatpush1.msra.mxu0 0.0
    %1429 = vmatprep.subr.mxu0 0.0
    %1430 = vmatpush1.msra.mxu0 0.0
    %1431 = vmatprep.subr.mxu0 0.0
    %1432 = vmatpush1.msra.mxu0 0.0
    %1433 = vmatprep.subr.mxu0 0.0
    %1434 = vmatpush1.msra.mxu0 0.0
    %1435 = vmatprep.subr.mxu0 0.0
    %1436 = vmatpush1.msra.mxu0 0.0
    %1437 = vmatprep.subr.mxu0 0.0
    %1438 = vmatpush1.msra.mxu0 0.0
    %1439 = vmatprep.subr.mxu0 0.0
    %1440 = vmatpush1.msra.mxu0 0.0
    %1441 = vmatprep.subr.mxu0 0.0
    %1442 = vmatpush1.msra.mxu0 0.0
    %1443 = vmatprep.subr.mxu0 0.0
    %1444 = vmatpush1.msra.mxu0 0.0
    %1445 = vmatprep.subr.mxu0 0.0
    %1446 = vmatpush1.msra.mxu0 0.0
    %1447 = vmatprep.subr.mxu0 0.0
    %1448 = vmatpush1.msra.mxu0 0.0
    %1449 = vmatprep.subr.mxu0 0.0
    %1450 = vmatpush1.msra.mxu0 0.0
    %1451 = vmatprep.subr.mxu0 0.0
    %1452 = vmatpush1.msra.mxu0 0.0
    %1453 = vmatprep.mubr.f32.mxu0 0.0
    %1454 = vmatmul.mubr.f32.gmra.mrb[0].mxu0 %v1313
    %v1455 = vpop.f32.mrb[0].mxu0
    %v1456 = vadd.f32 0.0, %v1455
    %v1457 = vpop.f32.mrb[0].mxu0
    %1458 = vdwg.mxu0
    %v1459 = vadd.f32 %v1315, %v1385
    %v1460 = vxor.u32 %v1459, 2147483648
    %v1461 = vmul.f32 %v1460, 1.442695
    %v1462 = vpow.pop %v1461
    %v1463 = vadd.f32 %v1462, 1.0
    %v1464 = vrcp.pop %v1463
    %v1465 = vmul.f32 1.0, %v1464
    %v1466 = vadd.f32 %v1316, %v1387
    %v1467 = vxor.u32 %v1466, 2147483648
    %v1468 = vmul.f32 %v1467, 1.442695
    %v1469 = vpow.pop %v1468
    %v1470 = vadd.f32 %v1469, 1.0
    %v1471 = vrcp.pop %v1470
    %v1472 = vmul.f32 1.0, %v1471
    %v1473 = vadd.f32 %v1456, %v458
    %v1474 = vmul.f32 %v1465, %v1473
    %v1475 = vadd.f32 %v1317, %v1474
    %v1476 = vtanh.pop %v1475
    %v1477 = vsub.f32 1.0, %v1472
    %v1478 = vmul.f32 %v1477, %v1476
    %v1479 = vmul.f32 %v1472, %v1313
    %v1480 = vadd.f32 %v1478, %v1479
    %1481 = vst [vmem:[#allocation3] sm:$0xff] %v1480
    %s1482 = scalar_lea.vmem [#allocation13], 40
    %1483 = vst [vmem:[%s1482] sm:$0xff] %v1480
    %v1484 = vld [vmem:[#allocation3] sm:$0xff]
    %s1485 = scalar_lea.vmem [#allocation2], 144
    %v1486 = vld [vmem:[%s1485] sm:$0xff]
    %v1487 = vld [vmem:[%s1485 + $0x8] sm:$0xff]
    %v1488 = vld [vmem:[%s1485 + $0x10] sm:$0xff]
    %1489 = vmatprep.subr.mxu0 %v406
    %1490 = vmatpush1.msra.mxu0 %v405
    %1491 = vmatprep.subr.mxu0 %v409
    %1492 = vmatpush1.msra.mxu0 %v408
    %1493 = vmatprep.subr.mxu0 %v412
    %1494 = vmatpush1.msra.mxu0 %v411
    %1495 = vmatprep.subr.mxu0 %v415
    %1496 = vmatpush1.msra.mxu0 %v414
    %1497 = vmatprep.subr.mxu0 %v418
    %1498 = vmatpush1.msra.mxu0 %v417
    %1499 = vmatprep.subr.mxu0 %v421
    %1500 = vmatpush1.msra.mxu0 %v420
    %1501 = vmatprep.subr.mxu0 %v424
    %1502 = vmatpush1.msra.mxu0 %v423
    %1503 = vmatprep.subr.mxu0 %v427
    %1504 = vmatpush1.msra.mxu0 %v426
    %1505 = vmatprep.subr.mxu0 %v430
    %1506 = vmatpush1.msra.mxu0 %v429
    %1507 = vmatprep.subr.mxu0 %v433
    %1508 = vmatpush1.msra.mxu0 %v432
    %1509 = vmatprep.subr.mxu0 %v436
    %1510 = vmatpush1.msra.mxu0 %v435
    %1511 = vmatprep.subr.mxu0 %v439
    %1512 = vmatpush1.msra.mxu0 %v438
    %1513 = vmatprep.subr.mxu0 %v442
    %1514 = vmatpush1.msra.mxu0 %v441
    %1515 = vmatprep.subr.mxu0 %v445
    %1516 = vmatpush1.msra.mxu0 %v444
    %1517 = vmatprep.subr.mxu0 %v448
    %1518 = vmatpush1.msra.mxu0 %v447
    %1519 = vmatprep.subr.mxu0 %v451
    %1520 = vmatpush1.msra.mxu0 %v450
    %1521 = vmatprep.subr.mxu0 0.0
    %1522 = vmatpush1.msra.mxu0 0.0
    %1523 = vmatprep.subr.mxu0 0.0
    %1524 = vmatpush1.msra.mxu0 0.0
    %1525 = vmatprep.subr.mxu0 0.0
    %1526 = vmatpush1.msra.mxu0 0.0
    %1527 = vmatprep.subr.mxu0 0.0
    %1528 = vmatpush1.msra.mxu0 0.0
    %1529 = vmatprep.subr.mxu0 0.0
    %1530 = vmatpush1.msra.mxu0 0.0
    %1531 = vmatprep.subr.mxu0 0.0
    %1532 = vmatpush1.msra.mxu0 0.0
    %1533 = vmatprep.subr.mxu0 0.0
    %1534 = vmatpush1.msra.mxu0 0.0
    %1535 = vmatprep.subr.mxu0 0.0
    %1536 = vmatpush1.msra.mxu0 0.0
    %1537 = vmatprep.subr.mxu0 0.0
    %1538 = vmatpush1.msra.mxu0 0.0
    %1539 = vmatprep.subr.mxu0 0.0
    %1540 = vmatpush1.msra.mxu0 0.0
    %1541 = vmatprep.subr.mxu0 0.0
    %1542 = vmatpush1.msra.mxu0 0.0
    %1543 = vmatprep.subr.mxu0 0.0
    %1544 = vmatpush1.msra.mxu0 0.0
    %1545 = vmatprep.subr.mxu0 0.0
    %1546 = vmatpush1.msra.mxu0 0.0
    %1547 = vmatprep.subr.mxu0 0.0
    %1548 = vmatpush1.msra.mxu0 0.0
    %1549 = vmatprep.subr.mxu0 0.0
    %1550 = vmatpush1.msra.mxu0 0.0
    %1551 = vmatprep.subr.mxu0 0.0
    %1552 = vmatpush1.msra.mxu0 0.0
    %1553 = vmatprep.mubr.f32.mxu0 0.0
    %1554 = vmatmul.mubr.f32.gmra.mrb[0].mxu0 %v1484
    %v1555 = vpop.f32.mrb[0].mxu0
    %v1556 = vadd.f32 0.0, %v1555
    %v1557 = vpop.f32.mrb[0].mxu0
    %v1558 = vadd.f32 0.0, %v1557
    %1559 = vdwg.mxu0
    %1560 = vmatprep.subr.mxu0 0.0
    %1561 = vmatpush1.msra.mxu0 %v407
    %1562 = vmatprep.subr.mxu0 0.0
    %1563 = vmatpush1.msra.mxu0 %v410
    %1564 = vmatprep.subr.mxu0 0.0
    %1565 = vmatpush1.msra.mxu0 %v413
    %1566 = vmatprep.subr.mxu0 0.0
    %1567 = vmatpush1.msra.mxu0 %v416
    %1568 = vmatprep.subr.mxu0 0.0
    %1569 = vmatpush1.msra.mxu0 %v419
    %1570 = vmatprep.subr.mxu0 0.0
    %1571 = vmatpush1.msra.mxu0 %v422
    %1572 = vmatprep.subr.mxu0 0.0
    %1573 = vmatpush1.msra.mxu0 %v425
    %1574 = vmatprep.subr.mxu0 0.0
    %1575 = vmatpush1.msra.mxu0 %v428
    %1576 = vmatprep.subr.mxu0 0.0
    %1577 = vmatpush1.msra.mxu0 %v431
    %1578 = vmatprep.subr.mxu0 0.0
    %1579 = vmatpush1.msra.mxu0 %v434
    %1580 = vmatprep.subr.mxu0 0.0
    %1581 = vmatpush1.msra.mxu0 %v437
    %1582 = vmatprep.subr.mxu0 0.0
    %1583 = vmatpush1.msra.mxu0 %v440
    %1584 = vmatprep.subr.mxu0 0.0
    %1585 = vmatpush1.msra.mxu0 %v443
    %1586 = vmatprep.subr.mxu0 0.0
    %1587 = vmatpush1.msra.mxu0 %v446
    %1588 = vmatprep.subr.mxu0 0.0
    %1589 = vmatpush1.msra.mxu0 %v449
    %1590 = vmatprep.subr.mxu0 0.0
    %1591 = vmatpush1.msra.mxu0 %v452
    %1592 = vmatprep.subr.mxu0 0.0
    %1593 = vmatpush1.msra.mxu0 0.0
    %1594 = vmatprep.subr.mxu0 0.0
    %1595 = vmatpush1.msra.mxu0 0.0
    %1596 = vmatprep.subr.mxu0 0.0
    %1597 = vmatpush1.msra.mxu0 0.0
    %1598 = vmatprep.subr.mxu0 0.0
    %1599 = vmatpush1.msra.mxu0 0.0
    %1600 = vmatprep.subr.mxu0 0.0
    %1601 = vmatpush1.msra.mxu0 0.0
    %1602 = vmatprep.subr.mxu0 0.0
    %1603 = vmatpush1.msra.mxu0 0.0
    %1604 = vmatprep.subr.mxu0 0.0
    %1605 = vmatpush1.msra.mxu0 0.0
    %1606 = vmatprep.subr.mxu0 0.0
    %1607 = vmatpush1.msra.mxu0 0.0
    %1608 = vmatprep.subr.mxu0 0.0
    %1609 = vmatpush1.msra.mxu0 0.0
    %1610 = vmatprep.subr.mxu0 0.0
    %1611 = vmatpush1.msra.mxu0 0.0
    %1612 = vmatprep.subr.mxu0 0.0
    %1613 = vmatpush1.msra.mxu0 0.0
    %1614 = vmatprep.subr.mxu0 0.0
    %1615 = vmatpush1.msra.mxu0 0.0
    %1616 = vmatprep.subr.mxu0 0.0
    %1617 = vmatpush1.msra.mxu0 0.0
    %1618 = vmatprep.subr.mxu0 0.0
    %1619 = vmatpush1.msra.mxu0 0.0
    %1620 = vmatprep.subr.mxu0 0.0
    %1621 = vmatpush1.msra.mxu0 0.0
    %1622 = vmatprep.subr.mxu0 0.0
    %1623 = vmatpush1.msra.mxu0 0.0
    %1624 = vmatprep.mubr.f32.mxu0 0.0
    %1625 = vmatmul.mubr.f32.gmra.mrb[0].mxu0 %v1484
    %v1626 = vpop.f32.mrb[0].mxu0
    %v1627 = vadd.f32 0.0, %v1626
    %v1628 = vpop.f32.mrb[0].mxu0
    %1629 = vdwg.mxu0
    %v1630 = vadd.f32 %v1486, %v1556
    %v1631 = vxor.u32 %v1630, 2147483648
    %v1632 = vmul.f32 %v1631, 1.442695
    %v1633 = vpow.pop %v1632
    %v1634 = vadd.f32 %v1633, 1.0
    %v1635 = vrcp.pop %v1634
    %v1636 = vmul.f32 1.0, %v1635
    %v1637 = vadd.f32 %v1487, %v1558
    %v1638 = vxor.u32 %v1637, 2147483648
    %v1639 = vmul.f32 %v1638, 1.442695
    %v1640 = vpow.pop %v1639
    %v1641 = vadd.f32 %v1640, 1.0
    %v1642 = vrcp.pop %v1641
    %v1643 = vmul.f32 1.0, %v1642
    %v1644 = vadd.f32 %v1627, %v458
    %v1645 = vmul.f32 %v1636, %v1644
    %v1646 = vadd.f32 %v1488, %v1645
    %v1647 = vtanh.pop %v1646
    %v1648 = vsub.f32 1.0, %v1643
    %v1649 = vmul.f32 %v1648, %v1647
    %v1650 = vmul.f32 %v1643, %v1484
    %v1651 = vadd.f32 %v1649, %v1650
    %1652 = vst [vmem:[#allocation3] sm:$0xff] %v1651
    %s1653 = scalar_lea.vmem [#allocation13], 48
    %1654 = vst [vmem:[%s1653] sm:$0xff] %v1651
    %v1655 = vld [vmem:[#allocation3] sm:$0xff]
    %s1656 = scalar_lea.vmem [#allocation2], 168
    %v1657 = vld [vmem:[%s1656] sm:$0xff]
    %v1658 = vld [vmem:[%s1656 + $0x8] sm:$0xff]
    %v1659 = vld [vmem:[%s1656 + $0x10] sm:$0xff]
    %1660 = vmatprep.subr.mxu0 %v406
    %1661 = vmatpush1.msra.mxu0 %v405
    %1662 = vmatprep.subr.mxu0 %v409
    %1663 = vmatpush1.msra.mxu0 %v408
    %1664 = vmatprep.subr.mxu0 %v412
    %1665 = vmatpush1.msra.mxu0 %v411
    %1666 = vmatprep.subr.mxu0 %v415
    %1667 = vmatpush1.msra.mxu0 %v414
    %1668 = vmatprep.subr.mxu0 %v418
    %1669 = vmatpush1.msra.mxu0 %v417
    %1670 = vmatprep.subr.mxu0 %v421
    %1671 = vmatpush1.msra.mxu0 %v420
    %1672 = vmatprep.subr.mxu0 %v424
    %1673 = vmatpush1.msra.mxu0 %v423
    %1674 = vmatprep.subr.mxu0 %v427
    %1675 = vmatpush1.msra.mxu0 %v426
    %1676 = vmatprep.subr.mxu0 %v430
    %1677 = vmatpush1.msra.mxu0 %v429
    %1678 = vmatprep.subr.mxu0 %v433
    %1679 = vmatpush1.msra.mxu0 %v432
    %1680 = vmatprep.subr.mxu0 %v436
    %1681 = vmatpush1.msra.mxu0 %v435
    %1682 = vmatprep.subr.mxu0 %v439
    %1683 = vmatpush1.msra.mxu0 %v438
    %1684 = vmatprep.subr.mxu0 %v442
    %1685 = vmatpush1.msra.mxu0 %v441
    %1686 = vmatprep.subr.mxu0 %v445
    %1687 = vmatpush1.msra.mxu0 %v444
    %1688 = vmatprep.subr.mxu0 %v448
    %1689 = vmatpush1.msra.mxu0 %v447
    %1690 = vmatprep.subr.mxu0 %v451
    %1691 = vmatpush1.msra.mxu0 %v450
    %1692 = vmatprep.subr.mxu0 0.0
    %1693 = vmatpush1.msra.mxu0 0.0
    %1694 = vmatprep.subr.mxu0 0.0
    %1695 = vmatpush1.msra.mxu0 0.0
    %1696 = vmatprep.subr.mxu0 0.0
    %1697 = vmatpush1.msra.mxu0 0.0
    %1698 = vmatprep.subr.mxu0 0.0
    %1699 = vmatpush1.msra.mxu0 0.0
    %1700 = vmatprep.subr.mxu0 0.0
    %1701 = vmatpush1.msra.mxu0 0.0
    %1702 = vmatprep.subr.mxu0 0.0
    %1703 = vmatpush1.msra.mxu0 0.0
    %1704 = vmatprep.subr.mxu0 0.0
    %1705 = vmatpush1.msra.mxu0 0.0
    %1706 = vmatprep.subr.mxu0 0.0
    %1707 = vmatpush1.msra.mxu0 0.0
    %1708 = vmatprep.subr.mxu0 0.0
    %1709 = vmatpush1.msra.mxu0 0.0
    %1710 = vmatprep.subr.mxu0 0.0
    %1711 = vmatpush1.msra.mxu0 0.0
    %1712 = vmatprep.subr.mxu0 0.0
    %1713 = vmatpush1.msra.mxu0 0.0
    %1714 = vmatprep.subr.mxu0 0.0
    %1715 = vmatpush1.msra.mxu0 0.0
    %1716 = vmatprep.subr.mxu0 0.0
    %1717 = vmatpush1.msra.mxu0 0.0
    %1718 = vmatprep.subr.mxu0 0.0
    %1719 = vmatpush1.msra.mxu0 0.0
    %1720 = vmatprep.subr.mxu0 0.0
    %1721 = vmatpush1.msra.mxu0 0.0
    %1722 = vmatprep.subr.mxu0 0.0
    %1723 = vmatpush1.msra.mxu0 0.0
    %1724 = vmatprep.mubr.f32.mxu0 0.0
    %1725 = vmatmul.mubr.f32.gmra.mrb[0].mxu0 %v1655
    %v1726 = vpop.f32.mrb[0].mxu0
    %v1727 = vadd.f32 0.0, %v1726
    %v1728 = vpop.f32.mrb[0].mxu0
    %v1729 = vadd.f32 0.0, %v1728
    %1730 = vdwg.mxu0
    %1731 = vmatprep.subr.mxu0 0.0
    %1732 = vmatpush1.msra.mxu0 %v407
    %1733 = vmatprep.subr.mxu0 0.0
    %1734 = vmatpush1.msra.mxu0 %v410
    %1735 = vmatprep.subr.mxu0 0.0
    %1736 = vmatpush1.msra.mxu0 %v413
    %1737 = vmatprep.subr.mxu0 0.0
    %1738 = vmatpush1.msra.mxu0 %v416
    %1739 = vmatprep.subr.mxu0 0.0
    %1740 = vmatpush1.msra.mxu0 %v419
    %1741 = vmatprep.subr.mxu0 0.0
    %1742 = vmatpush1.msra.mxu0 %v422
    %1743 = vmatprep.subr.mxu0 0.0
    %1744 = vmatpush1.msra.mxu0 %v425
    %1745 = vmatprep.subr.mxu0 0.0
    %1746 = vmatpush1.msra.mxu0 %v428
    %1747 = vmatprep.subr.mxu0 0.0
    %1748 = vmatpush1.msra.mxu0 %v431
    %1749 = vmatprep.subr.mxu0 0.0
    %1750 = vmatpush1.msra.mxu0 %v434
    %1751 = vmatprep.subr.mxu0 0.0
    %1752 = vmatpush1.msra.mxu0 %v437
    %1753 = vmatprep.subr.mxu0 0.0
    %1754 = vmatpush1.msra.mxu0 %v440
    %1755 = vmatprep.subr.mxu0 0.0
    %1756 = vmatpush1.msra.mxu0 %v443
    %1757 = vmatprep.subr.mxu0 0.0
    %1758 = vmatpush1.msra.mxu0 %v446
    %1759 = vmatprep.subr.mxu0 0.0
    %1760 = vmatpush1.msra.mxu0 %v449
    %1761 = vmatprep.subr.mxu0 0.0
    %1762 = vmatpush1.msra.mxu0 %v452
    %1763 = vmatprep.subr.mxu0 0.0
    %1764 = vmatpush1.msra.mxu0 0.0
    %1765 = vmatprep.subr.mxu0 0.0
    %1766 = vmatpush1.msra.mxu0 0.0
    %1767 = vmatprep.subr.mxu0 0.0
    %1768 = vmatpush1.msra.mxu0 0.0
    %1769 = vmatprep.subr.mxu0 0.0
    %1770 = vmatpush1.msra.mxu0 0.0
    %1771 = vmatprep.subr.mxu0 0.0
    %1772 = vmatpush1.msra.mxu0 0.0
    %1773 = vmatprep.subr.mxu0 0.0
    %1774 = vmatpush1.msra.mxu0 0.0
    %1775 = vmatprep.subr.mxu0 0.0
    %1776 = vmatpush1.msra.mxu0 0.0
    %1777 = vmatprep.subr.mxu0 0.0
    %1778 = vmatpush1.msra.mxu0 0.0
    %1779 = vmatprep.subr.mxu0 0.0
    %1780 = vmatpush1.msra.mxu0 0.0
    %1781 = vmatprep.subr.mxu0 0.0
    %1782 = vmatpush1.msra.mxu0 0.0
    %1783 = vmatprep.subr.mxu0 0.0
    %1784 = vmatpush1.msra.mxu0 0.0
    %1785 = vmatprep.subr.mxu0 0.0
    %1786 = vmatpush1.msra.mxu0 0.0
    %1787 = vmatprep.subr.mxu0 0.0
    %1788 = vmatpush1.msra.mxu0 0.0
    %1789 = vmatprep.subr.mxu0 0.0
    %1790 = vmatpush1.msra.mxu0 0.0
    %1791 = vmatprep.subr.mxu0 0.0
    %1792 = vmatpush1.msra.mxu0 0.0
    %1793 = vmatprep.subr.mxu0 0.0
    %1794 = vmatpush1.msra.mxu0 0.0
    %1795 = vmatprep.mubr.f32.mxu0 0.0
    %1796 = vmatmul.mubr.f32.gmra.mrb[0].mxu0 %v1655
    %v1797 = vpop.f32.mrb[0].mxu0
    %v1798 = vadd.f32 0.0, %v1797
    %v1799 = vpop.f32.mrb[0].mxu0
    %1800 = vdwg.mxu0
    %v1801 = vadd.f32 %v1657, %v1727
    %v1802 = vxor.u32 %v1801, 2147483648
    %v1803 = vmul.f32 %v1802, 1.442695
    %v1804 = vpow.pop %v1803
    %v1805 = vadd.f32 %v1804, 1.0
    %v1806 = vrcp.pop %v1805
    %v1807 = vmul.f32 1.0, %v1806
    %v1808 = vadd.f32 %v1658, %v1729
    %v1809 = vxor.u32 %v1808, 2147483648
    %v1810 = vmul.f32 %v1809, 1.442695
    %v1811 = vpow.pop %v1810
    %v1812 = vadd.f32 %v1811, 1.0
    %v1813 = vrcp.pop %v1812
    %v1814 = vmul.f32 1.0, %v1813
    %v1815 = vadd.f32 %v1798, %v458
    %v1816 = vmul.f32 %v1807, %v1815
    %v1817 = vadd.f32 %v1659, %v1816
    %v1818 = vtanh.pop %v1817
    %v1819 = vsub.f32 1.0, %v1814
    %v1820 = vmul.f32 %v1819, %v1818
    %v1821 = vmul.f32 %v1814, %v1655
    %v1822 = vadd.f32 %v1820, %v1821
    %1823 = vst [vmem:[#allocation3] sm:$0xff] %v1822
    %s1824 = scalar_lea.vmem [#allocation13], 56
    %1825 = vst [vmem:[%s1824] sm:$0xff] %v1822
    // Predicated region
    $region46: #{tpu_custom_call.1} parent=1 // pred_check
      _
    $region47: #{tpu_custom_call.1} parent=1 // pred_check_branch
      %1827 = sbr.rel (0) target = $region49
    $region48: #{tpu_custom_call.1} parent=1 // pred_region
      %s1829 = ssub.s32 1024, 1024
      %1830 = vsyncadd [#allocation6], %s1829
      %s1831 = sshll.u32 [#allocation13], 4
      %s1832 = int_to_ptr.vmem [resolvable:$true] %s1831
      %1837 = dma.vmem_to_hbm [thread:$0]  %s1832, 1024, %s5, [#allocation6], 128, 128, 8
    $region49: #{tpu_custom_call.1} parent=1 // pred_fallthru
      _
    // Predicated region
    $region50: #{tpu_custom_call.1} parent=1 // pred_check
      _
    $region51: #{tpu_custom_call.1} parent=1 // pred_check_branch
      %1839 = sbr.rel (0) target = $region53
    $region52: #{tpu_custom_call.1} parent=1 // pred_region
      %1840 = dma.done [#allocation6], 1024
    $region53: #{tpu_custom_call.1} parent=1 // pred_fallthru
      _
    %1841 = vsyncpa [#allocation5], 1
    %1842 = vsyncpa [#allocation8], 1
    %1843 = vsyncpa [#allocation11], 1
    %1844 = vsyncpa [#allocation6], 1

</llo_original>
